<compile_context>
chip_gen: v7x
topology: tpu7x:2x2x1
jax: 0.10.0
libtpu: 0.0.40
codegen_flags: <defaults>
</compile_context>

<pallas_src>
import math
from functools import partial

import numpy as np
import jax
import jax.numpy as jnp
from jax.experimental import pallas as pl
from jax.experimental.pallas import tpu as pltpu


# ---------------------------------------------------------------------------
# theta coefficients (numeric equivalent of the sympy/scipy calculate_theta2;
# coefficients are returned in increasing power order, like the reference)
# ---------------------------------------------------------------------------
def calculate_theta2(d):
    thetas = []
    for i in range(d + 1):
        p1 = np.zeros(i + 1)
        p1[i] = 0.5 ** i                                         # (x/2)^i
        m = d - i
        p2 = np.array([math.comb(m, k) * ((-0.5) ** k) for k in range(m + 1)])  # (1-x/2)^(d-i)
        poly = np.convolve(p1, p2)                               # increasing powers
        beta = math.gamma(i + 1) * math.gamma(d + 1 - i) / math.gamma(d + 2)
        thetas.append([float(c / beta) for c in poly])
    return thetas


# ---------------------------------------------------------------------------
# helpers
# ---------------------------------------------------------------------------
def _vmem_limit_bytes():
    """Per-generation scoped-VMEM limit (~0.85 x physical capacity)."""
    try:
        cap = pltpu.get_tpu_info().vmem_capacity_bytes
        return int(cap * 0.85)
    except Exception:
        return 64 * 1024 * 1024          # conservative fallback


def _pick_tn(n):
    """Destination-column tile width for streaming A_T (lane dim, mult. of 128)."""
    if n <= 2048:
        return n                          # fully resident (int8: <= 8 MiB dbl-buf)
    for t in (1024, 512, 256, 128):
        if n % t == 0:
            return t
    return n                              # fallback: full rows


# ---------------------------------------------------------------------------
# fused Pallas kernel: whole WeightFusion forward, grid = (R, K-1, N/tn)
# ---------------------------------------------------------------------------
def weight_fusion_kernel(xT_ref, w1t_ref, b1_ref, w2t_ref, b2_ref,
                         aT_ref, dinv_ref, w3e0_ref, w3er_ref, b3_ref, nw_ref,
                         w4t_ref, b4_ref, oT_ref,
                         h_scr, acc_scr, f_scr, fs_scr, msg_scr, hnew_scr,
                         *, tn):
    r = pl.program_id(0)          # relation
    k = pl.program_id(1)          # propagation level (computes f_{k+1} from f_k)
    j = pl.program_id(2)          # destination-column tile of A_T
    R = pl.num_programs(0)
    KL = pl.num_programs(1)       # = K - 1 propagation levels
    NT = pl.num_programs(2)
    N = msg_scr.shape[1]

    dinv = dinv_ref[0]            # (1, N) fp32 lane vector, clamp(in_deg,1)**-0.5

    # ---- very first grid step: input MLP  h = relu(W2t @ relu(W1t @ xT + b1) + b2)
    @pl.when((r == 0) & (k == 0) & (j == 0))
    def _mlp():
        t = jnp.dot(w1t_ref[...], xT_ref[...],
                    preferred_element_type=jnp.float32) + b1_ref[...]
        t = jnp.maximum(t, 0.0)
        t = jnp.dot(w2t_ref[...], t,
                    preferred_element_type=jnp.float32) + b2_ref[...]
        h_scr[...] = jnp.maximum(t, 0.0)
        acc_scr[...] = jnp.zeros_like(acc_scr)

    # ---- start of a relation: f_0 = h (chained), level-0 linear3 contribution
    @pl.when((k == 0) & (j == 0))
    def _relation_start():
        f0 = h_scr[...]
        f_scr[...] = f0
        hnew_scr[...] = jnp.dot(w3e0_ref[...], f0,
                                preferred_element_type=jnp.float32) + b3_ref[...]

    # ---- start of a propagation level: scale by D^-1/2 and cast to bf16 once
    @pl.when(j == 0)
    def _level_start():
        fs_scr[...] = (f_scr[...] * dinv).astype(fs_scr.dtype)

    # ---- per destination tile:  msg_T[:, tile] = (dinv*f)_T @ A_T[:, tile]
    a_bf = aT_ref[0].astype(jnp.bfloat16)                 # int8 0/1 -> bf16 (VPU)
    msg = jnp.dot(fs_scr[...], a_bf, preferred_element_type=jnp.float32)
    if tn == N:
        msg_scr[...] = msg
    else:
        col0 = pl.multiple_of(j * tn, tn)
        msg_scr[:, pl.ds(col0, tn)] = msg

    # ---- end of a level: f_{k+1} = f_k - D^-1/2 * msg; add its W3_eff term
    @pl.when(j == NT - 1)
    def _level_end():
        f_new = f_scr[...] - dinv * msg_scr[...]
        f_scr[...] = f_new
        hnew_scr[...] = hnew_scr[...] + jnp.dot(
            w3er_ref[0], f_new, preferred_element_type=jnp.float32)

    # ---- end of a relation: chain h, accumulate softmax(rel_w)-weighted sum
    @pl.when((k == KL - 1) & (j == NT - 1))
    def _relation_end():
        hn = hnew_scr[...]
        h_scr[...] = hn
        acc_scr[...] = acc_scr[...] + nw_ref[r] * hn

    # ---- very last grid step: ReLU + linear4, lane-dense (C_pad, N) output
    @pl.when((r == R - 1) & (k == KL - 1) & (j == NT - 1))
    def _finalize():
        z = jnp.maximum(acc_scr[...], 0.0)
        oT_ref[...] = jnp.dot(w4t_ref[...], z,
                              preferred_element_type=jnp.float32) + b4_ref[...]


# ---------------------------------------------------------------------------
# wrapper
# ---------------------------------------------------------------------------
def weight_fusion_forward(in_feat, adjs, params, thetas):
    N, F = in_feat.shape
    H = params["w2"].shape[0]
    C = params["w4"].shape[1]
    R = adjs.shape[0]
    K = len(thetas)                 # = d + 1 coefficients per polynomial
    KL = K - 1                      # propagation levels

    # ---- wrapper-side (plain XLA) preprocessing ----------------------------
    # theta folded into W3:  W3_eff[k] = sum_j theta[j][k] * W3[j*H:(j+1)*H];
    # stored transposed per level so the kernel does  W3_eff[k].T @ f_k.
    w3 = params["w3"]
    w3e_t = jnp.stack(
        [sum(thetas[j][k] * w3[j * H:(j + 1) * H, :] for j in range(K)).T
         for k in range(K)], axis=0)                                # (K, H, H)
    w3e0_t = w3e_t[0]                                               # level 0
    w3er_t = w3e_t[1:]                                              # levels 1..K-1

    # per-relation D^-1/2 as a lane vector (in-degree = row sum over src)
    deg = jnp.sum(adjs, axis=2)                                     # (R, N)
    dinv = jax.lax.rsqrt(jnp.maximum(deg, 1.0))[:, None, :]         # (R, 1, N)

    # adjacency transposed (A_T[src, dst]) and stored as int8 (entries are 0/1)
    adjT_i8 = jnp.swapaxes(adjs, 1, 2).astype(jnp.int8)             # (R, N, N)

    # softmax over the size-1 last dim of relation_weights (identically 1.0,
    # kept for faithfulness to the PyTorch module)
    norm_w = jax.nn.softmax(params["relation_weights"], axis=-1).reshape(R)
    norm_w = norm_w.astype(jnp.float32)

    # transposed inputs / weights for the (H, N) working layout
    xT = in_feat.T                                                  # (F, N)
    w1t, b1t = params["w1"].T, params["b1"].T                       # (H,F),(H,1)
    w2t, b2t = params["w2"].T, params["b2"].T                       # (H,H),(H,1)
    b3t = params["b3"].T                                            # (H,1)
    C8 = ((C + 7) // 8) * 8                                         # sublane pad
    w4t = jnp.zeros((C8, H), jnp.float32).at[:C, :].set(params["w4"].T)
    b4t = jnp.zeros((C8, 1), jnp.float32).at[:C, :].set(params["b4"].T)

    tn = _pick_tn(N)
    NT = N // tn

    vmem = lambda: pl.BlockSpec(memory_space=pltpu.MemorySpace.VMEM)
    smem = lambda: pl.BlockSpec(memory_space=pltpu.MemorySpace.SMEM)

    outT = pl.pallas_call(
        partial(weight_fusion_kernel, tn=tn),
        out_shape=jax.ShapeDtypeStruct((C8, N), jnp.float32),
        grid_spec=pltpu.PrefetchScalarGridSpec(
            num_scalar_prefetch=0,
            grid=(R, KL, NT),
            in_specs=[
                vmem(),                                              # xT
                vmem(), vmem(), vmem(), vmem(),                      # w1t b1 w2t b2
                pl.BlockSpec((1, N, tn), lambda r, k, j: (r, 0, j)),  # A_T tile (i8)
                pl.BlockSpec((1, 1, N), lambda r, k, j: (r, 0, 0)),   # dinv_r lane vec
                vmem(),                                              # W3_eff_0^T
                pl.BlockSpec((1, H, H), lambda r, k, j: (k, 0, 0)),   # W3_eff_{k+1}^T
                vmem(),                                              # b3
                smem(),                                              # norm_w (R,)
                vmem(), vmem(),                                      # W4^T pad, b4 pad
            ],
            out_specs=pl.BlockSpec((C8, N), lambda r, k, j: (0, 0)),
            scratch_shapes=[pltpu.VMEM((H, N), jnp.float32),   # h   (chained)
                            pltpu.VMEM((H, N), jnp.float32),   # acc (weighted sum)
                            pltpu.VMEM((H, N), jnp.float32),   # f_k
                            pltpu.VMEM((H, N), jnp.bfloat16),  # (dinv*f) bf16
                            pltpu.VMEM((H, N), jnp.float32),   # msg
                            pltpu.VMEM((H, N), jnp.float32)],  # h_new accumulator
        ),
        compiler_params=pltpu.CompilerParams(
            dimension_semantics=("arbitrary", "arbitrary", "arbitrary"),
            vmem_limit_bytes=_vmem_limit_bytes(),
        ),
    )(xT, w1t, b1t, w2t, b2t, adjT_i8, dinv, w3e0_t, w3er_t, b3t, norm_w,
      w4t, b4t)

    return outT[:C, :].T


# ---------------------------------------------------------------------------
# pure-JAX fp32 reference (for correctness check)
# ---------------------------------------------------------------------------
def reference_forward(in_feat, adjs, params, thetas):
    h = jnp.maximum(in_feat @ params["w1"] + params["b1"], 0.0)
    h = jnp.maximum(h @ params["w2"] + params["b2"], 0.0)
    K = len(thetas[0])
    h_all = []
    for A in adjs:
        dinv = jnp.maximum(jnp.sum(A, axis=1, keepdims=True), 1.0) ** -0.5
        feats = [h]
        for _ in range(1, K):
            f = feats[-1]
            feats.append(f - dinv * (A @ (dinv * f)))
        hcat = jnp.concatenate(
            [sum(th[k] * feats[k] for k in range(K)) for th in thetas], axis=-1)
        h = hcat @ params["w3"] + params["b3"]
        h_all.append(h)
    h_stack = jnp.stack(h_all, 0)
    w = jax.nn.softmax(params["relation_weights"], axis=-1)
    out = jnp.sum(h_stack * w, axis=0)
    out = jnp.maximum(out, 0.0)
    return out @ params["w4"] + params["b4"]


# ---------------------------------------------------------------------------
# deterministic parameter init (query/key/value and GCNconv params are unused
# in the reference forward and therefore not instantiated)
# ---------------------------------------------------------------------------
def init_params(key, in_feats, h_feats, num_classes, n_relations, n_thetas):
    def lin(k, fin, fout):
        lim = 1.0 / math.sqrt(fin)
        kw, kb = jax.random.split(k)
        w = jax.random.uniform(kw, (fin, fout), jnp.float32, -lim, lim)
        b = jax.random.uniform(kb, (1, fout), jnp.float32, -lim, lim)
        return w, b

    ks = jax.random.split(key, 4)
    w1, b1 = lin(ks[0], in_feats, h_feats)
    w2, b2 = lin(ks[1], h_feats, h_feats)
    w3, b3 = lin(ks[2], h_feats * n_thetas, h_feats)
    w4, b4 = lin(ks[3], h_feats, num_classes)
    return dict(
        w1=w1, b1=b1, w2=w2, b2=b2, w3=w3, b3=b3, w4=w4, b4=b4,
        relation_weights=jnp.ones((n_relations, 1, 1), jnp.float32),  # torch.ones(R,1,1)
    )


if __name__ == "__main__":
    N, IN_FEATS, H_FEATS, NUM_CLASSES = 64, 16, 32, 4
    d = 2
    relations_idx = [0, 1]
    R = len(relations_idx)
    thetas = calculate_theta2(d)          # 3 polynomials of degree 2 (K = 3)

    key = jax.random.PRNGKey(0)
    k_params, k_feat, k_adj = jax.random.split(key, 3)
    params = init_params(k_params, IN_FEATS, H_FEATS, NUM_CLASSES, R, len(thetas))
    in_feat = jax.random.normal(k_feat, (N, IN_FEATS), jnp.float32)

    # synthetic dense adjacencies (one per selected relation), with self-loops
    adj_list = []
    for ka in jax.random.split(k_adj, R):
        a = (jax.random.uniform(ka, (N, N)) < 0.15).astype(jnp.float32)
        a = jnp.maximum(a, jnp.eye(N, dtype=jnp.float32))   # dgl.add_self_loop
        adj_list.append(a)
    adjs = jnp.stack(adj_list, axis=0)                      # (R, N, N), fp32

    out = weight_fusion_forward(in_feat, adjs, params, thetas)
    out = jax.block_until_ready(out)

    ref = reference_forward(in_feat, adjs, params, thetas)
    # Tolerance relaxed vs fp32 reference because the Laplacian messages use a
    # bf16 LHS (fp32 accumulation); errors stay ~1e-3 and compound across hops.
    np.testing.assert_allclose(np.asarray(out), np.asarray(ref), rtol=2e-2, atol=2e-2)

    # TODO(synk): the GCNconv branch (WFusion_use_WFusion=False) is a config
    # alternative and is not implemented; only the PolyConv path is kernelized.
    print("KERNEL_OK")
</pallas_src>

<mosaic_0001>
module attributes {stable_mosaic.version = 11 : i64} {
  func.func @weight_fusion_kernel(%arg0: i32, %arg1: i32, %arg2: i32, %arg3: memref<16x64xf32, #tpu.memory_space<vmem>>, %arg4: memref<32x16xf32, #tpu.memory_space<vmem>>, %arg5: memref<32x1xf32, #tpu.memory_space<vmem>>, %arg6: memref<32x32xf32, #tpu.memory_space<vmem>>, %arg7: memref<32x1xf32, #tpu.memory_space<vmem>>, %arg8: memref<1x64x64xi8, #tpu.memory_space<vmem>>, %arg9: memref<1x1x64xf32, #tpu.memory_space<vmem>>, %arg10: memref<32x32xf32, #tpu.memory_space<vmem>>, %arg11: memref<1x32x32xf32, #tpu.memory_space<vmem>>, %arg12: memref<32x1xf32, #tpu.memory_space<vmem>>, %arg13: memref<2xf32, #tpu.memory_space<smem>>, %arg14: memref<8x32xf32, #tpu.memory_space<vmem>>, %arg15: memref<8x1xf32, #tpu.memory_space<vmem>>, %arg16: memref<8x64xf32, #tpu.memory_space<vmem>>, %arg17: memref<32x64xf32, #tpu.memory_space<vmem>>, %arg18: memref<32x64xf32, #tpu.memory_space<vmem>>, %arg19: memref<32x64xf32, #tpu.memory_space<vmem>>, %arg20: memref<32x64xbf16, #tpu.memory_space<vmem>>, %arg21: memref<32x64xf32, #tpu.memory_space<vmem>>, %arg22: memref<32x64xf32, #tpu.memory_space<vmem>>) attributes {dimension_semantics = [#tpu.dimension_semantics<arbitrary>, #tpu.dimension_semantics<arbitrary>, #tpu.dimension_semantics<arbitrary>], iteration_bounds = array<i64: 2, 2, 1>, scalar_prefetch = 0 : i64, scratch_operands = 6 : i64, tpu.core_type = #tpu.core_type<tc>, window_params = [{pipeline_mode = #tpu.pipeline_mode<synchronous>, transform_indices = @transform_0, window_bounds = array<i64: 16, 64>}, {pipeline_mode = #tpu.pipeline_mode<synchronous>, transform_indices = @transform_1, window_bounds = array<i64: 32, 16>}, {pipeline_mode = #tpu.pipeline_mode<synchronous>, transform_indices = @transform_2, window_bounds = array<i64: 32, 1>}, {pipeline_mode = #tpu.pipeline_mode<synchronous>, transform_indices = @transform_3, window_bounds = array<i64: 32, 32>}, {pipeline_mode = #tpu.pipeline_mode<synchronous>, transform_indices = @transform_4, window_bounds = array<i64: 32, 1>}, {transform_indices = @transform_5, window_bounds = array<i64: 1, 64, 64>}, {transform_indices = @transform_6, window_bounds = array<i64: 1, 1, 64>}, {pipeline_mode = #tpu.pipeline_mode<synchronous>, transform_indices = @transform_7, window_bounds = array<i64: 32, 32>}, {transform_indices = @transform_8, window_bounds = array<i64: 1, 32, 32>}, {pipeline_mode = #tpu.pipeline_mode<synchronous>, transform_indices = @transform_9, window_bounds = array<i64: 32, 1>}, {transform_indices = @transform_10, window_bounds = array<i64: 2>}, {pipeline_mode = #tpu.pipeline_mode<synchronous>, transform_indices = @transform_11, window_bounds = array<i64: 8, 32>}, {pipeline_mode = #tpu.pipeline_mode<synchronous>, transform_indices = @transform_12, window_bounds = array<i64: 8, 1>}, {pipeline_mode = #tpu.pipeline_mode<synchronous>, transform_indices = @transform_13, window_bounds = array<i64: 8, 64>}]} {
    %c0 = arith.constant 0 : index
    %c0_0 = arith.constant 0 : index
    %c0_1 = arith.constant 0 : index
    %0 = vector.load %arg9[%c0, %c0_0, %c0_1] : memref<1x1x64xf32, #tpu.memory_space<vmem>>, vector<1x1x64xf32>
    %1 = vector.shape_cast %0 : vector<1x1x64xf32> to vector<1x64xf32>
    %c0_i32 = arith.constant 0 : i32
    %2 = arith.cmpi eq, %arg0, %c0_i32 : i32
    %c0_i32_2 = arith.constant 0 : i32
    %3 = arith.cmpi eq, %arg1, %c0_i32_2 : i32
    %4 = arith.andi %2, %3 : i1
    %c0_i32_3 = arith.constant 0 : i32
    %5 = arith.cmpi eq, %arg2, %c0_i32_3 : i32
    %6 = arith.andi %4, %5 : i1
    %7 = arith.extui %6 : i1 to i32
    %c0_i32_4 = arith.constant 0 : i32
    %8 = arith.cmpi ne, %7, %c0_i32_4 : i32
    scf.if %8 {
      %c0_25 = arith.constant 0 : index
      %c0_26 = arith.constant 0 : index
      %38 = vector.load %arg4[%c0_25, %c0_26] : memref<32x16xf32, #tpu.memory_space<vmem>>, vector<32x16xf32>
      %c0_27 = arith.constant 0 : index
      %c0_28 = arith.constant 0 : index
      %39 = vector.load %arg3[%c0_27, %c0_28] : memref<16x64xf32, #tpu.memory_space<vmem>>, vector<16x64xf32>
      %cst_29 = arith.constant dense<0.000000e+00> : vector<32x64xf32>
      %40 = tpu.matmul %38, %39, %cst_29 {dimension_numbers = #tpu.dot_dimension_numbers<[1], [0], [0], [1], [0, 0, 1, 1], [], []>} : vector<32x16xf32>, vector<16x64xf32>, vector<32x64xf32> -> vector<32x64xf32>
      %c0_30 = arith.constant 0 : index
      %c0_31 = arith.constant 0 : index
      %41 = vector.load %arg5[%c0_30, %c0_31] : memref<32x1xf32, #tpu.memory_space<vmem>>, vector<32x1xf32>
      %42 = vector.broadcast %41 : vector<32x1xf32> to vector<32x64xf32>
      %43 = arith.addf %40, %42 : vector<32x64xf32>
      %cst_32 = arith.constant 0.000000e+00 : f32
      %44 = vector.broadcast %cst_32 : f32 to vector<32x64xf32>
      %45 = arith.maximumf %43, %44 : vector<32x64xf32>
      %c0_33 = arith.constant 0 : index
      %c0_34 = arith.constant 0 : index
      %46 = vector.load %arg6[%c0_33, %c0_34] : memref<32x32xf32, #tpu.memory_space<vmem>>, vector<32x32xf32>
      %cst_35 = arith.constant dense<0.000000e+00> : vector<32x64xf32>
      %47 = tpu.matmul %46, %45, %cst_35 {dimension_numbers = #tpu.dot_dimension_numbers<[1], [0], [0], [1], [0, 0, 1, 1], [], []>} : vector<32x32xf32>, vector<32x64xf32>, vector<32x64xf32> -> vector<32x64xf32>
      %c0_36 = arith.constant 0 : index
      %c0_37 = arith.constant 0 : index
      %48 = vector.load %arg7[%c0_36, %c0_37] : memref<32x1xf32, #tpu.memory_space<vmem>>, vector<32x1xf32>
      %49 = vector.broadcast %48 : vector<32x1xf32> to vector<32x64xf32>
      %50 = arith.addf %47, %49 : vector<32x64xf32>
      %cst_38 = arith.constant 0.000000e+00 : f32
      %51 = vector.broadcast %cst_38 : f32 to vector<32x64xf32>
      %52 = arith.maximumf %50, %51 : vector<32x64xf32>
      %c0_39 = arith.constant 0 : index
      %c0_40 = arith.constant 0 : index
      %53 = vector.load %arg17[%c0_39, %c0_40] : memref<32x64xf32, #tpu.memory_space<vmem>>, vector<32x64xf32>
      tpu.vector_store %arg17[%c0_39, %c0_40], %52 {strides = array<i32>} : memref<32x64xf32, #tpu.memory_space<vmem>>, vector<32x64xf32>,
      %cst_41 = arith.constant 0.000000e+00 : f32
      %54 = vector.broadcast %cst_41 : f32 to vector<32x64xf32>
      %c0_42 = arith.constant 0 : index
      %c0_43 = arith.constant 0 : index
      %55 = vector.load %arg18[%c0_42, %c0_43] : memref<32x64xf32, #tpu.memory_space<vmem>>, vector<32x64xf32>
      tpu.vector_store %arg18[%c0_42, %c0_43], %54 {strides = array<i32>} : memref<32x64xf32, #tpu.memory_space<vmem>>, vector<32x64xf32>,
    } else {
    }
    %c0_i32_5 = arith.constant 0 : i32
    %9 = arith.cmpi eq, %arg1, %c0_i32_5 : i32
    %c0_i32_6 = arith.constant 0 : i32
    %10 = arith.cmpi eq, %arg2, %c0_i32_6 : i32
    %11 = arith.andi %9, %10 : i1
    %12 = arith.extui %11 : i1 to i32
    %c0_i32_7 = arith.constant 0 : i32
    %13 = arith.cmpi ne, %12, %c0_i32_7 : i32
    scf.if %13 {
      %c0_25 = arith.constant 0 : index
      %c0_26 = arith.constant 0 : index
      %38 = vector.load %arg17[%c0_25, %c0_26] : memref<32x64xf32, #tpu.memory_space<vmem>>, vector<32x64xf32>
      %c0_27 = arith.constant 0 : index
      %c0_28 = arith.constant 0 : index
      %39 = vector.load %arg19[%c0_27, %c0_28] : memref<32x64xf32, #tpu.memory_space<vmem>>, vector<32x64xf32>
      tpu.vector_store %arg19[%c0_27, %c0_28], %38 {strides = array<i32>} : memref<32x64xf32, #tpu.memory_space<vmem>>, vector<32x64xf32>,
      %c0_29 = arith.constant 0 : index
      %c0_30 = arith.constant 0 : index
      %40 = vector.load %arg10[%c0_29, %c0_30] : memref<32x32xf32, #tpu.memory_space<vmem>>, vector<32x32xf32>
      %cst_31 = arith.constant dense<0.000000e+00> : vector<32x64xf32>
      %41 = tpu.matmul %40, %38, %cst_31 {dimension_numbers = #tpu.dot_dimension_numbers<[1], [0], [0], [1], [0, 0, 1, 1], [], []>} : vector<32x32xf32>, vector<32x64xf32>, vector<32x64xf32> -> vector<32x64xf32>
      %c0_32 = arith.constant 0 : index
      %c0_33 = arith.constant 0 : index
      %42 = vector.load %arg12[%c0_32, %c0_33] : memref<32x1xf32, #tpu.memory_space<vmem>>, vector<32x1xf32>
      %43 = vector.broadcast %42 : vector<32x1xf32> to vector<32x64xf32>
      %44 = arith.addf %41, %43 : vector<32x64xf32>
      %c0_34 = arith.constant 0 : index
      %c0_35 = arith.constant 0 : index
      %45 = vector.load %arg22[%c0_34, %c0_35] : memref<32x64xf32, #tpu.memory_space<vmem>>, vector<32x64xf32>
      tpu.vector_store %arg22[%c0_34, %c0_35], %44 {strides = array<i32>} : memref<32x64xf32, #tpu.memory_space<vmem>>, vector<32x64xf32>,
    } else {
    }
    %c0_i32_8 = arith.constant 0 : i32
    %14 = arith.cmpi eq, %arg2, %c0_i32_8 : i32
    %15 = arith.extui %14 : i1 to i32
    %c0_i32_9 = arith.constant 0 : i32
    %16 = arith.cmpi ne, %15, %c0_i32_9 : i32
    scf.if %16 {
      %c0_25 = arith.constant 0 : index
      %c0_26 = arith.constant 0 : index
      %38 = vector.load %arg19[%c0_25, %c0_26] : memref<32x64xf32, #tpu.memory_space<vmem>>, vector<32x64xf32>
      %39 = vector.broadcast %1 : vector<1x64xf32> to vector<32x64xf32>
      %40 = arith.mulf %38, %39 : vector<32x64xf32>
      %41 = arith.truncf %40 : vector<32x64xf32> to vector<32x64xbf16>
      %c0_27 = arith.constant 0 : index
      %c0_28 = arith.constant 0 : index
      %42 = vector.load %arg20[%c0_27, %c0_28] : memref<32x64xbf16, #tpu.memory_space<vmem>>, vector<32x64xbf16>
      tpu.vector_store %arg20[%c0_27, %c0_28], %41 {strides = array<i32>} : memref<32x64xbf16, #tpu.memory_space<vmem>>, vector<32x64xbf16>,
    } else {
    }
    %c0_10 = arith.constant 0 : index
    %c0_11 = arith.constant 0 : index
    %c0_12 = arith.constant 0 : index
    %17 = vector.load %arg8[%c0_10, %c0_11, %c0_12] : memref<1x64x64xi8, #tpu.memory_space<vmem>>, vector<1x64x64xi8>
    %18 = vector.shape_cast %17 : vector<1x64x64xi8> to vector<64x64xi8>
    %19 = arith.sitofp %18 : vector<64x64xi8> to vector<64x64xbf16>
    %c0_13 = arith.constant 0 : index
    %c0_14 = arith.constant 0 : index
    %20 = vector.load %arg20[%c0_13, %c0_14] : memref<32x64xbf16, #tpu.memory_space<vmem>>, vector<32x64xbf16>
    %cst = arith.constant dense<0.000000e+00> : vector<32x64xf32>
    %21 = tpu.matmul %20, %19, %cst {dimension_numbers = #tpu.dot_dimension_numbers<[1], [0], [0], [1], [0, 0, 1, 1], [], []>} : vector<32x64xbf16>, vector<64x64xbf16>, vector<32x64xf32> -> vector<32x64xf32>
    %c0_15 = arith.constant 0 : index
    %c0_16 = arith.constant 0 : index
    %22 = vector.load %arg21[%c0_15, %c0_16] : memref<32x64xf32, #tpu.memory_space<vmem>>, vector<32x64xf32>
    tpu.vector_store %arg21[%c0_15, %c0_16], %21 {strides = array<i32>} : memref<32x64xf32, #tpu.memory_space<vmem>>, vector<32x64xf32>,
    %c0_i32_17 = arith.constant 0 : i32
    %23 = arith.cmpi eq, %arg2, %c0_i32_17 : i32
    %24 = arith.extui %23 : i1 to i32
    %c0_i32_18 = arith.constant 0 : i32
    %25 = arith.cmpi ne, %24, %c0_i32_18 : i32
    scf.if %25 {
      %c0_25 = arith.constant 0 : index
      %c0_26 = arith.constant 0 : index
      %38 = vector.load %arg19[%c0_25, %c0_26] : memref<32x64xf32, #tpu.memory_space<vmem>>, vector<32x64xf32>
      %c0_27 = arith.constant 0 : index
      %c0_28 = arith.constant 0 : index
      %39 = vector.load %arg21[%c0_27, %c0_28] : memref<32x64xf32, #tpu.memory_space<vmem>>, vector<32x64xf32>
      %40 = vector.broadcast %1 : vector<1x64xf32> to vector<32x64xf32>
      %41 = arith.mulf %40, %39 : vector<32x64xf32>
      %42 = arith.subf %38, %41 : vector<32x64xf32>
      %c0_29 = arith.constant 0 : index
      %c0_30 = arith.constant 0 : index
      %43 = vector.load %arg19[%c0_29, %c0_30] : memref<32x64xf32, #tpu.memory_space<vmem>>, vector<32x64xf32>
      tpu.vector_store %arg19[%c0_29, %c0_30], %42 {strides = array<i32>} : memref<32x64xf32, #tpu.memory_space<vmem>>, vector<32x64xf32>,
      %c0_31 = arith.constant 0 : index
      %c0_32 = arith.constant 0 : index
      %44 = vector.load %arg22[%c0_31, %c0_32] : memref<32x64xf32, #tpu.memory_space<vmem>>, vector<32x64xf32>
      %c0_33 = arith.constant 0 : index
      %c0_34 = arith.constant 0 : index
      %c0_35 = arith.constant 0 : index
      %45 = vector.load %arg11[%c0_33, %c0_34, %c0_35] : memref<1x32x32xf32, #tpu.memory_space<vmem>>, vector<1x32x32xf32>
      %46 = vector.shape_cast %45 : vector<1x32x32xf32> to vector<32x32xf32>
      %cst_36 = arith.constant dense<0.000000e+00> : vector<32x64xf32>
      %47 = tpu.matmul %46, %42, %cst_36 {dimension_numbers = #tpu.dot_dimension_numbers<[1], [0], [0], [1], [0, 0, 1, 1], [], []>} : vector<32x32xf32>, vector<32x64xf32>, vector<32x64xf32> -> vector<32x64xf32>
      %48 = arith.addf %44, %47 : vector<32x64xf32>
      %c0_37 = arith.constant 0 : index
      %c0_38 = arith.constant 0 : index
      %49 = vector.load %arg22[%c0_37, %c0_38] : memref<32x64xf32, #tpu.memory_space<vmem>>, vector<32x64xf32>
      tpu.vector_store %arg22[%c0_37, %c0_38], %48 {strides = array<i32>} : memref<32x64xf32, #tpu.memory_space<vmem>>, vector<32x64xf32>,
    } else {
    }
    %c1_i32 = arith.constant 1 : i32
    %26 = arith.cmpi eq, %arg1, %c1_i32 : i32
    %c0_i32_19 = arith.constant 0 : i32
    %27 = arith.cmpi eq, %arg2, %c0_i32_19 : i32
    %28 = arith.andi %26, %27 : i1
    %29 = arith.extui %28 : i1 to i32
    %c0_i32_20 = arith.constant 0 : i32
    %30 = arith.cmpi ne, %29, %c0_i32_20 : i32
    scf.if %30 {
      %c0_25 = arith.constant 0 : index
      %c0_26 = arith.constant 0 : index
      %38 = vector.load %arg22[%c0_25, %c0_26] : memref<32x64xf32, #tpu.memory_space<vmem>>, vector<32x64xf32>
      %c0_27 = arith.constant 0 : index
      %c0_28 = arith.constant 0 : index
      %39 = vector.load %arg17[%c0_27, %c0_28] : memref<32x64xf32, #tpu.memory_space<vmem>>, vector<32x64xf32>
      tpu.vector_store %arg17[%c0_27, %c0_28], %38 {strides = array<i32>} : memref<32x64xf32, #tpu.memory_space<vmem>>, vector<32x64xf32>,
      %c0_29 = arith.constant 0 : index
      %c0_30 = arith.constant 0 : index
      %40 = vector.load %arg18[%c0_29, %c0_30] : memref<32x64xf32, #tpu.memory_space<vmem>>, vector<32x64xf32>
      %41 = arith.index_cast %arg0 : i32 to index
      %42 = memref.load %arg13[%41] : memref<2xf32, #tpu.memory_space<smem>>
      %43 = vector.broadcast %42 : f32 to vector<32x64xf32>
      %44 = arith.mulf %43, %38 : vector<32x64xf32>
      %45 = arith.addf %40, %44 : vector<32x64xf32>
      %c0_31 = arith.constant 0 : index
      %c0_32 = arith.constant 0 : index
      %46 = vector.load %arg18[%c0_31, %c0_32] : memref<32x64xf32, #tpu.memory_space<vmem>>, vector<32x64xf32>
      tpu.vector_store %arg18[%c0_31, %c0_32], %45 {strides = array<i32>} : memref<32x64xf32, #tpu.memory_space<vmem>>, vector<32x64xf32>,
    } else {
    }
    %c1_i32_21 = arith.constant 1 : i32
    %31 = arith.cmpi eq, %arg0, %c1_i32_21 : i32
    %c1_i32_22 = arith.constant 1 : i32
    %32 = arith.cmpi eq, %arg1, %c1_i32_22 : i32
    %33 = arith.andi %31, %32 : i1
    %c0_i32_23 = arith.constant 0 : i32
    %34 = arith.cmpi eq, %arg2, %c0_i32_23 : i32
    %35 = arith.andi %33, %34 : i1
    %36 = arith.extui %35 : i1 to i32
    %c0_i32_24 = arith.constant 0 : i32
    %37 = arith.cmpi ne, %36, %c0_i32_24 : i32
    scf.if %37 {
      %c0_25 = arith.constant 0 : index
      %c0_26 = arith.constant 0 : index
      %38 = vector.load %arg18[%c0_25, %c0_26] : memref<32x64xf32, #tpu.memory_space<vmem>>, vector<32x64xf32>
      %cst_27 = arith.constant 0.000000e+00 : f32
      %39 = vector.broadcast %cst_27 : f32 to vector<32x64xf32>
      %40 = arith.maximumf %38, %39 : vector<32x64xf32>
      %c0_28 = arith.constant 0 : index
      %c0_29 = arith.constant 0 : index
      %41 = vector.load %arg14[%c0_28, %c0_29] : memref<8x32xf32, #tpu.memory_space<vmem>>, vector<8x32xf32>
      %cst_30 = arith.constant dense<0.000000e+00> : vector<8x64xf32>
      %42 = tpu.matmul %41, %40, %cst_30 {dimension_numbers = #tpu.dot_dimension_numbers<[1], [0], [0], [1], [0, 0, 1, 1], [], []>} : vector<8x32xf32>, vector<32x64xf32>, vector<8x64xf32> -> vector<8x64xf32>
      %c0_31 = arith.constant 0 : index
      %c0_32 = arith.constant 0 : index
      %43 = vector.load %arg15[%c0_31, %c0_32] : memref<8x1xf32, #tpu.memory_space<vmem>>, vector<8x1xf32>
      %44 = vector.broadcast %43 : vector<8x1xf32> to vector<8x64xf32>
      %45 = arith.addf %42, %44 : vector<8x64xf32>
      %c0_33 = arith.constant 0 : index
      %c0_34 = arith.constant 0 : index
      %46 = vector.load %arg16[%c0_33, %c0_34] : memref<8x64xf32, #tpu.memory_space<vmem>>, vector<8x64xf32>
      tpu.vector_store %arg16[%c0_33, %c0_34], %45 {strides = array<i32>} : memref<8x64xf32, #tpu.memory_space<vmem>>, vector<8x64xf32>,
    } else {
    }
    return
  }
  func.func @transform_0(%arg0: i32, %arg1: i32, %arg2: i32) -> (i32, i32) {
    %c0_i32 = arith.constant 0 : i32
    %c0_i32_0 = arith.constant 0 : i32
    %c0_i32_1 = arith.constant 0 : i32
    return %c0_i32, %c0_i32_0 : i32, i32
  }
  func.func @transform_1(%arg0: i32, %arg1: i32, %arg2: i32) -> (i32, i32) {
    %c0_i32 = arith.constant 0 : i32
    %c0_i32_0 = arith.constant 0 : i32
    %c0_i32_1 = arith.constant 0 : i32
    return %c0_i32, %c0_i32_0 : i32, i32
  }
  func.func @transform_2(%arg0: i32, %arg1: i32, %arg2: i32) -> (i32, i32) {
    %c0_i32 = arith.constant 0 : i32
    %c0_i32_0 = arith.constant 0 : i32
    %c0_i32_1 = arith.constant 0 : i32
    return %c0_i32, %c0_i32_0 : i32, i32
  }
  func.func @transform_3(%arg0: i32, %arg1: i32, %arg2: i32) -> (i32, i32) {
    %c0_i32 = arith.constant 0 : i32
    %c0_i32_0 = arith.constant 0 : i32
    %c0_i32_1 = arith.constant 0 : i32
    return %c0_i32, %c0_i32_0 : i32, i32
  }
  func.func @transform_4(%arg0: i32, %arg1: i32, %arg2: i32) -> (i32, i32) {
    %c0_i32 = arith.constant 0 : i32
    %c0_i32_0 = arith.constant 0 : i32
    %c0_i32_1 = arith.constant 0 : i32
    return %c0_i32, %c0_i32_0 : i32, i32
  }
  func.func @transform_5(%arg0: i32, %arg1: i32, %arg2: i32) -> (i32, i32, i32) {
    %c0_i32 = arith.constant 0 : i32
    %c0_i32_0 = arith.constant 0 : i32
    return %arg0, %c0_i32, %arg2 : i32, i32, i32
  }
  func.func @transform_6(%arg0: i32, %arg1: i32, %arg2: i32) -> (i32, i32, i32) {
    %c0_i32 = arith.constant 0 : i32
    %c0_i32_0 = arith.constant 0 : i32
    %c0_i32_1 = arith.constant 0 : i32
    return %arg0, %c0_i32, %c0_i32_0 : i32, i32, i32
  }
  func.func @transform_7(%arg0: i32, %arg1: i32, %arg2: i32) -> (i32, i32) {
    %c0_i32 = arith.constant 0 : i32
    %c0_i32_0 = arith.constant 0 : i32
    %c0_i32_1 = arith.constant 0 : i32
    return %c0_i32, %c0_i32_0 : i32, i32
  }
  func.func @transform_8(%arg0: i32, %arg1: i32, %arg2: i32) -> (i32, i32, i32) {
    %c0_i32 = arith.constant 0 : i32
    %c0_i32_0 = arith.constant 0 : i32
    %c0_i32_1 = arith.constant 0 : i32
    return %arg1, %c0_i32, %c0_i32_0 : i32, i32, i32
  }
  func.func @transform_9(%arg0: i32, %arg1: i32, %arg2: i32) -> (i32, i32) {
    %c0_i32 = arith.constant 0 : i32
    %c0_i32_0 = arith.constant 0 : i32
    %c0_i32_1 = arith.constant 0 : i32
    return %c0_i32, %c0_i32_0 : i32, i32
  }
  func.func @transform_10(%arg0: i32, %arg1: i32, %arg2: i32) -> i32 {
    %c0_i32 = arith.constant 0 : i32
    %c0_i32_0 = arith.constant 0 : i32
    return %c0_i32 : i32
  }
  func.func @transform_11(%arg0: i32, %arg1: i32, %arg2: i32) -> (i32, i32) {
    %c0_i32 = arith.constant 0 : i32
    %c0_i32_0 = arith.constant 0 : i32
    %c0_i32_1 = arith.constant 0 : i32
    return %c0_i32, %c0_i32_0 : i32, i32
  }
  func.func @transform_12(%arg0: i32, %arg1: i32, %arg2: i32) -> (i32, i32) {
    %c0_i32 = arith.constant 0 : i32
    %c0_i32_0 = arith.constant 0 : i32
    %c0_i32_1 = arith.constant 0 : i32
    return %c0_i32, %c0_i32_0 : i32, i32
  }
  func.func @transform_13(%arg0: i32, %arg1: i32, %arg2: i32) -> (i32, i32) {
    %c0_i32 = arith.constant 0 : i32
    %c0_i32_0 = arith.constant 0 : i32
    %c0_i32_1 = arith.constant 0 : i32
    return %c0_i32, %c0_i32_0 : i32, i32
  }
}

</mosaic_0001>

<llo_original>
// kernel: tpu_custom_call.1
$region0: #{tpu_custom_call.1}
  #allocation0 [shape = 'u32[]', space=smem, size = 0x4, offset = 0x4, fixed_abs, tag = 'smem constant byte address 0x4 - core index']
  #allocation1 [shape = 'u32[144,128]{1,0:T(1,128)}', space=vmem, size = 0x12000, scoped, tag = 'internal scratch']
  #allocation2 [shape = 'f32[32,64]{1,0:T(8,128)}', space=vmem, size = 0x4000, scoped, tag = 'scratch operand']
  #allocation3 [shape = 'f32[32,64]{1,0:T(8,128)}', space=vmem, size = 0x4000, scoped, tag = 'scratch operand']
  #allocation4 [shape = 'f32[32,64]{1,0:T(8,128)}', space=vmem, size = 0x4000, scoped, tag = 'scratch operand']
  #allocation5 [shape = 'bf16[32,64]{1,0:T(16,128)(2,1)}', space=vmem, size = 0x2000, scoped, tag = 'scratch operand']
  #allocation6 [shape = 'f32[32,64]{1,0:T(8,128)}', space=vmem, size = 0x4000, scoped, tag = 'scratch operand']
  #allocation7 [shape = 'f32[32,64]{1,0:T(8,128)}', space=vmem, size = 0x4000, scoped, tag = 'scratch operand']
  %s0 = inlined_call_operand.hbm [shape: f32[16,64], index: 0, kind: input, shape index: {}]
  %s1 = inlined_call_operand.hbm [shape: f32[32,16], index: 1, kind: input, shape index: {}]
  %s2 = inlined_call_operand.hbm [shape: f32[32,1], index: 2, kind: input, shape index: {}]
  %s3 = inlined_call_operand.hbm [shape: f32[32,32], index: 3, kind: input, shape index: {}]
  %s4 = inlined_call_operand.hbm [shape: f32[32,1], index: 4, kind: input, shape index: {}]
  %s5 = inlined_call_operand.hbm [shape: s8[2,64,64], index: 5, kind: input, shape index: {}]
  %s6 = inlined_call_operand.hbm [shape: f32[2,1,64], index: 6, kind: input, shape index: {}]
  %s7 = inlined_call_operand.hbm [shape: f32[32,32], index: 7, kind: input, shape index: {}]
  %s8 = inlined_call_operand.hbm [shape: f32[2,32,32], index: 8, kind: input, shape index: {}]
  %s9 = inlined_call_operand.hbm [shape: f32[32,1], index: 9, kind: input, shape index: {}]
  %s10 = inlined_call_operand.hbm [shape: f32[2], index: 10, kind: input, shape index: {}]
  %s11 = inlined_call_operand.hbm [shape: f32[8,32], index: 11, kind: input, shape index: {}]
  %s12 = inlined_call_operand.hbm [shape: f32[8,1], index: 12, kind: input, shape index: {}]
  %s13 = inlined_call_operand.hbm [shape: f32[8,64], index: 13, kind: output, shape index: {}]
  %s14 = sld [smem:[#allocation0]]
  $region161: #{tpu_custom_call.1} parent=0
    _
  %s16 = ssub.s32 1, %s14
  %s17 = scalar_select 0, %s16, %s14
  $region1: #{tpu_custom_call.1} parent=0
    #allocation8 [shape = 'u8[8192]{0}', space=vmem, size = 0x2000, scoped, tag = 'input window, operand 0, single buffered']
    #allocation9 [shape = 's32[2]{0}', space=sflag, size = 0x8, scoped, tag = 'scoped memory for tpu_custom_call.1']
    #allocation10 [shape = 's32[2]{0}', space=sflag, size = 0x8, scoped, tag = 'scoped memory for tpu_custom_call.1']
    #allocation11 [shape = 's32[2]{0}', space=sflag, size = 0x8, scoped, tag = 'scoped memory for tpu_custom_call.1']
    #allocation12 [shape = 'u8[16384]{0}', space=vmem, size = 0x4000, scoped, tag = 'input window, operand 1, single buffered']
    #allocation13 [shape = 's32[1]{0}', space=sflag, size = 0x4, scoped, tag = 'scoped memory for tpu_custom_call.1']
    #allocation14 [shape = 'u8[16384]{0}', space=vmem, size = 0x4000, scoped, tag = 'input window, operand 2, single buffered']
    #allocation15 [shape = 'u8[16384]{0}', space=vmem, size = 0x4000, scoped, tag = 'input window, operand 3, single buffered']
    #allocation16 [shape = 's32[1]{0}', space=sflag, size = 0x4, scoped, tag = 'scoped memory for tpu_custom_call.1']
    #allocation17 [shape = 'u8[16384]{0}', space=vmem, size = 0x4000, scoped, tag = 'input window, operand 4, single buffered']
    #allocation18 [shape = 'u8[16384]{0}', space=vmem, size = 0x4000, scoped, tag = 'input window, operand 5']
    #allocation19 [shape = 's32[2]{0}', space=sflag, size = 0x8, scoped, tag = 'scoped memory for tpu_custom_call.1']
    #allocation20 [shape = 'u8[1024]{0}', space=vmem, size = 0x400, scoped, tag = 'input window, operand 6']
    #allocation21 [shape = 'u8[16384]{0}', space=vmem, size = 0x4000, scoped, tag = 'input window, operand 7, single buffered']
    #allocation22 [shape = 's32[1]{0}', space=sflag, size = 0x4, scoped, tag = 'scoped memory for tpu_custom_call.1']
    #allocation23 [shape = 'u8[32768]{0}', space=vmem, size = 0x8000, scoped, tag = 'input window, operand 8']
    #allocation24 [shape = 'u8[16384]{0}', space=vmem, size = 0x4000, scoped, tag = 'input window, operand 9, single buffered']
    #allocation25 [shape = 'u8[512]{0}', space=smem, size = 0x200, scoped, tag = 'input window, operand 10, single buffered']
    #allocation26 [shape = 'u8[4096]{0}', space=vmem, size = 0x1000, scoped, tag = 'input window, operand 11, single buffered']
    #allocation27 [shape = 'u8[4096]{0}', space=vmem, size = 0x1000, scoped, tag = 'input window, operand 12, single buffered']
    #allocation28 [shape = 'u8[4096]{0}', space=vmem, size = 0x1000, scoped, tag = 'output window, operand 0, single buffered']
    %18 = vsyncpa [#allocation9], 0
    %19 = vsyncpa [#allocation13], 0
    %20 = vsyncpa [#allocation16], 0
    %21 = vsyncpa [#allocation19], 0
    %s22 = scalar_lea.sflag [#allocation19], 1
    %23 = vsyncpa %s22, 0
    %24 = vsyncpa [#allocation22], 0
    %25 = vsyncpa [#allocation11], 0
    %26 = vsyncpa [#allocation10], 0
    loop: start=0, step=1, limit=6
    $region2: #{tpu_custom_call.1} parent=1 // loop_pre_header
      _
    $region3: #{tpu_custom_call.1} parent=1 // loop_header
      %s28 = sphi 0, %s32
      %p29 = scmp.ge.s32.totalorder %s28, 6
      %s35 = sphi 0, %s54
      %s36 = sphi 0, %s50
      %s37 = sphi 0, %s46
      %s38 = sphi 0, %s35
      %s39 = sphi 0, %s36
      %s40 = sphi 0, %s37
      %s41 = sphi 0, %s38
      %s42 = sphi 0, %s39
      %s43 = sphi 0, %s40
      %s55 = sphi 0, %s55
      %s57 = sphi 0, %s55
      %s58 = sphi 0, %s57
      %s72 = sphi 0, %s58
      %s76 = sphi 0, %s76
      %s78 = sphi 0, %s76
      %s79 = sphi 0, %s78
      %s93 = sphi 0, %s79
      %s97 = sphi 0, %s97
      %s99 = sphi 0, %s97
      %s100 = sphi 0, %s99
      %s114 = sphi 0, %s100
      %s118 = sphi 0, %s118
      %s120 = sphi 0, %s118
      %s121 = sphi 0, %s120
      %s135 = sphi 0, %s121
      %s139 = sphi 0, %s139
      %s141 = sphi 0, %s139
      %s142 = sphi 0, %s141
      %s156 = sphi 0, %s142
      %s164 = sphi 0, %s166
      %s167 = sphi 0, %s164
      %s168 = sphi 0, %s167
      %s184 = sphi 0, %s168
      %s190 = sphi 0, %s192
      %s193 = sphi 0, %s190
      %s194 = sphi 0, %s193
      %s210 = sphi 0, %s194
      %s214 = sphi 0, %s214
      %s216 = sphi 0, %s214
      %s217 = sphi 0, %s216
      %s231 = sphi 0, %s217
      %s237 = sphi 0, %s239
      %s240 = sphi 0, %s237
      %s241 = sphi 0, %s240
      %s257 = sphi 0, %s241
      %s261 = sphi 0, %s261
      %s263 = sphi 0, %s261
      %s264 = sphi 0, %s263
      %s278 = sphi 0, %s264
      %s282 = sphi 0, %s282
      %s284 = sphi 0, %s282
      %s285 = sphi 0, %s284
      %s299 = sphi 0, %s285
      %s303 = sphi 0, %s303
      %s305 = sphi 0, %s303
      %s306 = sphi 0, %s305
      %s320 = sphi 0, %s306
      %s324 = sphi 0, %s324
      %s326 = sphi 0, %s324
      %s327 = sphi 0, %s326
      %s341 = sphi 0, %s327
      %s345 = sphi 0, %s345
      %s347 = sphi 0, %s345
      %s348 = sphi 0, %s347
      %s362 = sphi 0, %s348
    $region4: #{tpu_custom_call.1} parent=1 // loop_header_branch
      %31 = sbr.rel (%p29) target = $region8
    $region5: #{tpu_custom_call.1} parent=1 // loop_body
      %s33 = ssub.s32 %s28, 1
      %s34 = ssub.s32 %s28, 2
      %s44 = sadd.s32 1, %s37
      %p45 = scmp.ge.s32.totalorder %s44, 1
      %s46 = scalar_select %p45, 0, %s44
      %s47 = sadd.s32 1, %s36
      %s48 = scalar_select %p45, %s47, %s36
      %p49 = scmp.ge.s32.totalorder %s48, 2
      %s50 = scalar_select %p49, 0, %s48
      %s51 = sadd.s32 1, %s35
      %s52 = scalar_select %p49, %s51, %s35
      %p53 = scmp.ge.s32.totalorder %s52, 2
      %s54 = scalar_select %p53, 0, %s52
      %s56 = sadd.s32 %s55, 1
      %p59 = scmp.eq.s32.totalorder %s28, 3
      %p60 = scmp.ne.s32.totalorder %s55, %s57
      %p61 = scmp.eq.s32.totalorder %s28, 0
      %p62 = por %p60, %p61
      %p63 = scmp.ne.s32.totalorder %s55, %s57
      %p64 = scmp.eq.s32.totalorder %s33, 3
      %p65 = por %p63, %p64
      %p66 = scmp.ne.s32.totalorder %s57, %s58
      %p67 = scmp.eq.s32.totalorder %s33, 0
      %p68 = por %p66, %p67
      %p69 = scmp.ne.s32.totalorder %s57, %s58
      %p70 = scmp.eq.s32.totalorder %s34, 3
      %p71 = por %p69, %p70
      %p73 = scmp.ne.s32.totalorder %s58, %s72
      %p74 = scmp.eq.s32.totalorder %s34, 0
      %p75 = por %p73, %p74
      %s77 = sadd.s32 %s76, 1
      %p80 = scmp.eq.s32.totalorder %s28, 3
      %p81 = scmp.ne.s32.totalorder %s76, %s78
      %p82 = scmp.eq.s32.totalorder %s28, 0
      %p83 = por %p81, %p82
      %p84 = scmp.ne.s32.totalorder %s76, %s78
      %p85 = scmp.eq.s32.totalorder %s33, 3
      %p86 = por %p84, %p85
      %p87 = scmp.ne.s32.totalorder %s78, %s79
      %p88 = scmp.eq.s32.totalorder %s33, 0
      %p89 = por %p87, %p88
      %p90 = scmp.ne.s32.totalorder %s78, %s79
      %p91 = scmp.eq.s32.totalorder %s34, 3
      %p92 = por %p90, %p91
      %p94 = scmp.ne.s32.totalorder %s79, %s93
      %p95 = scmp.eq.s32.totalorder %s34, 0
      %p96 = por %p94, %p95
      %s98 = sadd.s32 %s97, 1
      %p101 = scmp.eq.s32.totalorder %s28, 3
      %p102 = scmp.ne.s32.totalorder %s97, %s99
      %p103 = scmp.eq.s32.totalorder %s28, 0
      %p104 = por %p102, %p103
      %p105 = scmp.ne.s32.totalorder %s97, %s99
      %p106 = scmp.eq.s32.totalorder %s33, 3
      %p107 = por %p105, %p106
      %p108 = scmp.ne.s32.totalorder %s99, %s100
      %p109 = scmp.eq.s32.totalorder %s33, 0
      %p110 = por %p108, %p109
      %p111 = scmp.ne.s32.totalorder %s99, %s100
      %p112 = scmp.eq.s32.totalorder %s34, 3
      %p113 = por %p111, %p112
      %p115 = scmp.ne.s32.totalorder %s100, %s114
      %p116 = scmp.eq.s32.totalorder %s34, 0
      %p117 = por %p115, %p116
      %s119 = sadd.s32 %s118, 1
      %p122 = scmp.eq.s32.totalorder %s28, 3
      %p123 = scmp.ne.s32.totalorder %s118, %s120
      %p124 = scmp.eq.s32.totalorder %s28, 0
      %p125 = por %p123, %p124
      %p126 = scmp.ne.s32.totalorder %s118, %s120
      %p127 = scmp.eq.s32.totalorder %s33, 3
      %p128 = por %p126, %p127
      %p129 = scmp.ne.s32.totalorder %s120, %s121
      %p130 = scmp.eq.s32.totalorder %s33, 0
      %p131 = por %p129, %p130
      %p132 = scmp.ne.s32.totalorder %s120, %s121
      %p133 = scmp.eq.s32.totalorder %s34, 3
      %p134 = por %p132, %p133
      %p136 = scmp.ne.s32.totalorder %s121, %s135
      %p137 = scmp.eq.s32.totalorder %s34, 0
      %p138 = por %p136, %p137
      %s140 = sadd.s32 %s139, 1
      %p143 = scmp.eq.s32.totalorder %s28, 3
      %p144 = scmp.ne.s32.totalorder %s139, %s141
      %p145 = scmp.eq.s32.totalorder %s28, 0
      %p146 = por %p144, %p145
      %p147 = scmp.ne.s32.totalorder %s139, %s141
      %p148 = scmp.eq.s32.totalorder %s33, 3
      %p149 = por %p147, %p148
      %p150 = scmp.ne.s32.totalorder %s141, %s142
      %p151 = scmp.eq.s32.totalorder %s33, 0
      %p152 = por %p150, %p151
      %p153 = scmp.ne.s32.totalorder %s141, %s142
      %p154 = scmp.eq.s32.totalorder %s34, 3
      %p155 = por %p153, %p154
      %p157 = scmp.ne.s32.totalorder %s142, %s156
      %p158 = scmp.eq.s32.totalorder %s34, 0
      %p159 = por %p157, %p158
      %s160 = ssub.s32 %s35, %s54
      %s161 = ssub.s32 %s37, %s46
      %s162 = sor.u32 %s160, %s161
      %p163 = scmp.eq.s32.totalorder %s162, 0
      %s165 = sadd.s32 %s164, 1
      %s166 = scalar_select %p163, %s164, %s165
      %p169 = pneg %p163
      %p170 = scmp.eq.s32.totalorder %s28, 3
      %p171 = por %p169, %p170
      %p172 = scmp.ne.s32.totalorder %s164, %s167
      %p173 = scmp.eq.s32.totalorder %s28, 0
      %p174 = por %p172, %p173
      %p175 = scmp.ne.s32.totalorder %s164, %s167
      %p176 = scmp.eq.s32.totalorder %s33, 3
      %p177 = por %p175, %p176
      %p178 = scmp.ne.s32.totalorder %s167, %s168
      %p179 = scmp.eq.s32.totalorder %s33, 0
      %p180 = por %p178, %p179
      %p181 = scmp.ne.s32.totalorder %s167, %s168
      %p182 = scmp.eq.s32.totalorder %s34, 3
      %p183 = por %p181, %p182
      %p185 = scmp.ne.s32.totalorder %s168, %s184
      %p186 = scmp.eq.s32.totalorder %s34, 0
      %p187 = por %p185, %p186
      %s188 = ssub.s32 %s35, %s54
      %p189 = scmp.eq.s32.totalorder %s188, 0
      %s191 = sadd.s32 %s190, 1
      %s192 = scalar_select %p189, %s190, %s191
      %p195 = pneg %p189
      %p196 = scmp.eq.s32.totalorder %s28, 3
      %p197 = por %p195, %p196
      %p198 = scmp.ne.s32.totalorder %s190, %s193
      %p199 = scmp.eq.s32.totalorder %s28, 0
      %p200 = por %p198, %p199
      %p201 = scmp.ne.s32.totalorder %s190, %s193
      %p202 = scmp.eq.s32.totalorder %s33, 3
      %p203 = por %p201, %p202
      %p204 = scmp.ne.s32.totalorder %s193, %s194
      %p205 = scmp.eq.s32.totalorder %s33, 0
      %p206 = por %p204, %p205
      %p207 = scmp.ne.s32.totalorder %s193, %s194
      %p208 = scmp.eq.s32.totalorder %s34, 3
      %p209 = por %p207, %p208
      %p211 = scmp.ne.s32.totalorder %s194, %s210
      %p212 = scmp.eq.s32.totalorder %s34, 0
      %p213 = por %p211, %p212
      %s215 = sadd.s32 %s214, 1
      %p218 = scmp.eq.s32.totalorder %s28, 3
      %p219 = scmp.ne.s32.totalorder %s214, %s216
      %p220 = scmp.eq.s32.totalorder %s28, 0
      %p221 = por %p219, %p220
      %p222 = scmp.ne.s32.totalorder %s214, %s216
      %p223 = scmp.eq.s32.totalorder %s33, 3
      %p224 = por %p222, %p223
      %p225 = scmp.ne.s32.totalorder %s216, %s217
      %p226 = scmp.eq.s32.totalorder %s33, 0
      %p227 = por %p225, %p226
      %p228 = scmp.ne.s32.totalorder %s216, %s217
      %p229 = scmp.eq.s32.totalorder %s34, 3
      %p230 = por %p228, %p229
      %p232 = scmp.ne.s32.totalorder %s217, %s231
      %p233 = scmp.eq.s32.totalorder %s34, 0
      %p234 = por %p232, %p233
      %s235 = ssub.s32 %s36, %s50
      %p236 = scmp.eq.s32.totalorder %s235, 0
      %s238 = sadd.s32 %s237, 1
      %s239 = scalar_select %p236, %s237, %s238
      %p242 = pneg %p236
      %p243 = scmp.eq.s32.totalorder %s28, 3
      %p244 = por %p242, %p243
      %p245 = scmp.ne.s32.totalorder %s237, %s240
      %p246 = scmp.eq.s32.totalorder %s28, 0
      %p247 = por %p245, %p246
      %p248 = scmp.ne.s32.totalorder %s237, %s240
      %p249 = scmp.eq.s32.totalorder %s33, 3
      %p250 = por %p248, %p249
      %p251 = scmp.ne.s32.totalorder %s240, %s241
      %p252 = scmp.eq.s32.totalorder %s33, 0
      %p253 = por %p251, %p252
      %p254 = scmp.ne.s32.totalorder %s240, %s241
      %p255 = scmp.eq.s32.totalorder %s34, 3
      %p256 = por %p254, %p255
      %p258 = scmp.ne.s32.totalorder %s241, %s257
      %p259 = scmp.eq.s32.totalorder %s34, 0
      %p260 = por %p258, %p259
      %s262 = sadd.s32 %s261, 1
      %p265 = scmp.eq.s32.totalorder %s28, 3
      %p266 = scmp.ne.s32.totalorder %s261, %s263
      %p267 = scmp.eq.s32.totalorder %s28, 0
      %p268 = por %p266, %p267
      %p269 = scmp.ne.s32.totalorder %s261, %s263
      %p270 = scmp.eq.s32.totalorder %s33, 3
      %p271 = por %p269, %p270
      %p272 = scmp.ne.s32.totalorder %s263, %s264
      %p273 = scmp.eq.s32.totalorder %s33, 0
      %p274 = por %p272, %p273
      %p275 = scmp.ne.s32.totalorder %s263, %s264
      %p276 = scmp.eq.s32.totalorder %s34, 3
      %p277 = por %p275, %p276
      %p279 = scmp.ne.s32.totalorder %s264, %s278
      %p280 = scmp.eq.s32.totalorder %s34, 0
      %p281 = por %p279, %p280
      %s283 = sadd.s32 %s282, 1
      %p286 = scmp.eq.s32.totalorder %s28, 3
      %p287 = scmp.ne.s32.totalorder %s282, %s284
      %p288 = scmp.eq.s32.totalorder %s28, 0
      %p289 = por %p287, %p288
      %p290 = scmp.ne.s32.totalorder %s282, %s284
      %p291 = scmp.eq.s32.totalorder %s33, 3
      %p292 = por %p290, %p291
      %p293 = scmp.ne.s32.totalorder %s284, %s285
      %p294 = scmp.eq.s32.totalorder %s33, 0
      %p295 = por %p293, %p294
      %p296 = scmp.ne.s32.totalorder %s284, %s285
      %p297 = scmp.eq.s32.totalorder %s34, 3
      %p298 = por %p296, %p297
      %p300 = scmp.ne.s32.totalorder %s285, %s299
      %p301 = scmp.eq.s32.totalorder %s34, 0
      %p302 = por %p300, %p301
      %s304 = sadd.s32 %s303, 1
      %p307 = scmp.eq.s32.totalorder %s28, 3
      %p308 = scmp.ne.s32.totalorder %s303, %s305
      %p309 = scmp.eq.s32.totalorder %s28, 0
      %p310 = por %p308, %p309
      %p311 = scmp.ne.s32.totalorder %s303, %s305
      %p312 = scmp.eq.s32.totalorder %s33, 3
      %p313 = por %p311, %p312
      %p314 = scmp.ne.s32.totalorder %s305, %s306
      %p315 = scmp.eq.s32.totalorder %s33, 0
      %p316 = por %p314, %p315
      %p317 = scmp.ne.s32.totalorder %s305, %s306
      %p318 = scmp.eq.s32.totalorder %s34, 3
      %p319 = por %p317, %p318
      %p321 = scmp.ne.s32.totalorder %s306, %s320
      %p322 = scmp.eq.s32.totalorder %s34, 0
      %p323 = por %p321, %p322
      %s325 = sadd.s32 %s324, 1
      %p328 = scmp.eq.s32.totalorder %s28, 3
      %p329 = scmp.ne.s32.totalorder %s324, %s326
      %p330 = scmp.eq.s32.totalorder %s28, 0
      %p331 = por %p329, %p330
      %p332 = scmp.ne.s32.totalorder %s324, %s326
      %p333 = scmp.eq.s32.totalorder %s33, 3
      %p334 = por %p332, %p333
      %p335 = scmp.ne.s32.totalorder %s326, %s327
      %p336 = scmp.eq.s32.totalorder %s33, 0
      %p337 = por %p335, %p336
      %p338 = scmp.ne.s32.totalorder %s326, %s327
      %p339 = scmp.eq.s32.totalorder %s34, 3
      %p340 = por %p338, %p339
      %p342 = scmp.ne.s32.totalorder %s327, %s341
      %p343 = scmp.eq.s32.totalorder %s34, 0
      %p344 = por %p342, %p343
      %s346 = sadd.s32 %s345, 1
      %p349 = scmp.eq.s32.totalorder %s28, 3
      %p350 = scmp.ne.s32.totalorder %s345, %s347
      %p351 = scmp.eq.s32.totalorder %s28, 0
      %p352 = por %p350, %p351
      %p353 = scmp.ne.s32.totalorder %s345, %s347
      %p354 = scmp.eq.s32.totalorder %s33, 3
      %p355 = por %p353, %p354
      %p356 = scmp.ne.s32.totalorder %s347, %s348
      %p357 = scmp.eq.s32.totalorder %s33, 0
      %p358 = por %p356, %p357
      %p359 = scmp.ne.s32.totalorder %s347, %s348
      %p360 = scmp.eq.s32.totalorder %s34, 3
      %p361 = por %p359, %p360
      %p363 = scmp.ne.s32.totalorder %s348, %s362
      %p364 = scmp.eq.s32.totalorder %s34, 0
      %p365 = por %p363, %p364
      %p366 = scmp.le.s32.totalorder 1, %s28
      %p367 = scmp.lt.s32.totalorder %s28, 5
      %p368 = pnand %p366, %p367
      %p369 = pneg %p368
      // Predicated region
      $region9: #{tpu_custom_call.1} parent=5 // pred_check
        _
      $region10: #{tpu_custom_call.1} parent=5 // pred_check_branch
        %371 = sbr.rel (%p368) target = $region12
      $region11: #{tpu_custom_call.1} parent=5 // pred_region
        %s372 = ssub.s32 %s28, 1
        // Predicated region
        $region13: #{tpu_custom_call.1} parent=11 // pred_check
          %p373 = pneg %p68
        $region14: #{tpu_custom_call.1} parent=11 // pred_check_branch
          %375 = sbr.rel (%p373) target = $region16
        $region15: #{tpu_custom_call.1} parent=11 // pred_region
          %s377 = ssub.s32 256, 256
          %378 = vsyncadd [#allocation9], %s377
          %s379 = sshll.u32 [#allocation8], 4
          %s380 = int_to_ptr.vmem [resolvable:$true] %s379
          %385 = dma.hbm_to_vmem [thread:$0]  %s0, 256, %s380, [#allocation9], 128, 128, 8
        $region16: #{tpu_custom_call.1} parent=11 // pred_fallthru
          _
        // Predicated region
        $region17: #{tpu_custom_call.1} parent=11 // pred_check
          %p386 = pneg %p89
        $region18: #{tpu_custom_call.1} parent=11 // pred_check_branch
          %388 = sbr.rel (%p386) target = $region20
        $region19: #{tpu_custom_call.1} parent=11 // pred_region
          %s390 = ssub.s32 512, 512
          %391 = vsyncadd [#allocation13], %s390
          %s392 = sshll.u32 [#allocation12], 4
          %s393 = int_to_ptr.vmem [resolvable:$true] %s392
          %398 = dma.hbm_to_vmem [thread:$0]  %s1, 512, %s393, [#allocation13], 128, 128, 8
        $region20: #{tpu_custom_call.1} parent=11 // pred_fallthru
          _
        // Predicated region
        $region21: #{tpu_custom_call.1} parent=11 // pred_check
          %p399 = pneg %p110
        $region22: #{tpu_custom_call.1} parent=11 // pred_check_branch
          %401 = sbr.rel (%p399) target = $region24
        $region23: #{tpu_custom_call.1} parent=11 // pred_region
          %s403 = ssub.s32 512, 512
          %404 = vsyncadd [#allocation13], %s403
          %s405 = sshll.u32 [#allocation14], 4
          %s406 = int_to_ptr.vmem [resolvable:$true] %s405
          %411 = dma.hbm_to_vmem [thread:$0]  %s2, 512, %s406, [#allocation13], 128, 128, 8
        $region24: #{tpu_custom_call.1} parent=11 // pred_fallthru
          _
        // Predicated region
        $region25: #{tpu_custom_call.1} parent=11 // pred_check
          %p412 = pneg %p131
        $region26: #{tpu_custom_call.1} parent=11 // pred_check_branch
          %414 = sbr.rel (%p412) target = $region28
        $region27: #{tpu_custom_call.1} parent=11 // pred_region
          %s416 = ssub.s32 512, 512
          %417 = vsyncadd [#allocation16], %s416
          %s418 = sshll.u32 [#allocation15], 4
          %s419 = int_to_ptr.vmem [resolvable:$true] %s418
          %424 = dma.hbm_to_vmem [thread:$0]  %s3, 512, %s419, [#allocation16], 128, 128, 8
        $region28: #{tpu_custom_call.1} parent=11 // pred_fallthru
          _
        // Predicated region
        $region29: #{tpu_custom_call.1} parent=11 // pred_check
          %p425 = pneg %p152
        $region30: #{tpu_custom_call.1} parent=11 // pred_check_branch
          %427 = sbr.rel (%p425) target = $region32
        $region31: #{tpu_custom_call.1} parent=11 // pred_region
          %s429 = ssub.s32 512, 512
          %430 = vsyncadd [#allocation16], %s429
          %s431 = sshll.u32 [#allocation17], 4
          %s432 = int_to_ptr.vmem [resolvable:$true] %s431
          %437 = dma.hbm_to_vmem [thread:$0]  %s4, 512, %s432, [#allocation16], 128, 128, 8
        $region32: #{tpu_custom_call.1} parent=11 // pred_fallthru
          _
        // Predicated region
        $region33: #{tpu_custom_call.1} parent=11 // pred_check
          %p438 = pneg %p227
        $region34: #{tpu_custom_call.1} parent=11 // pred_check_branch
          %440 = sbr.rel (%p438) target = $region36
        $region35: #{tpu_custom_call.1} parent=11 // pred_region
          %s442 = ssub.s32 512, 512
          %443 = vsyncadd [#allocation22], %s442
          %s444 = sshll.u32 [#allocation21], 4
          %s445 = int_to_ptr.vmem [resolvable:$true] %s444
          %450 = dma.hbm_to_vmem [thread:$0]  %s7, 512, %s445, [#allocation22], 128, 128, 8
        $region36: #{tpu_custom_call.1} parent=11 // pred_fallthru
          _
        // Predicated region
        $region37: #{tpu_custom_call.1} parent=11 // pred_check
          %p451 = pneg %p274
        $region38: #{tpu_custom_call.1} parent=11 // pred_check_branch
          %453 = sbr.rel (%p451) target = $region40
        $region39: #{tpu_custom_call.1} parent=11 // pred_region
          %s455 = ssub.s32 512, 512
          %456 = vsyncadd [#allocation13], %s455
          %s457 = sshll.u32 [#allocation24], 4
          %s458 = int_to_ptr.vmem [resolvable:$true] %s457
          %463 = dma.hbm_to_vmem [thread:$0]  %s9, 512, %s458, [#allocation13], 128, 128, 8
        $region40: #{tpu_custom_call.1} parent=11 // pred_fallthru
          _
        // Predicated region
        $region41: #{tpu_custom_call.1} parent=11 // pred_check
          %p464 = pneg %p295
        $region42: #{tpu_custom_call.1} parent=11 // pred_check_branch
          %466 = sbr.rel (%p464) target = $region44
        $region43: #{tpu_custom_call.1} parent=11 // pred_region
          %s468 = ssub.s32 16, 16
          %469 = vsyncadd [#allocation11], %s468
          %472 = dma.hbm_to_smem %s10, 16, [#allocation25], [#allocation11]
        $region44: #{tpu_custom_call.1} parent=11 // pred_fallthru
          _
        // Predicated region
        $region45: #{tpu_custom_call.1} parent=11 // pred_check
          %p473 = pneg %p316
        $region46: #{tpu_custom_call.1} parent=11 // pred_check_branch
          %475 = sbr.rel (%p473) target = $region48
        $region47: #{tpu_custom_call.1} parent=11 // pred_region
          %s477 = ssub.s32 128, 128
          %478 = vsyncadd [#allocation16], %s477
          %s480 = sshll.u32 [#allocation26], 4
          %s481 = int_to_ptr.vmem [resolvable:$true] %s480
          %483 = dma.hbm_to_vmem [thread:$0]  %s11, 128, %s481, [#allocation16]
        $region48: #{tpu_custom_call.1} parent=11 // pred_fallthru
          _
        // Predicated region
        $region49: #{tpu_custom_call.1} parent=11 // pred_check
          %p484 = pneg %p337
        $region50: #{tpu_custom_call.1} parent=11 // pred_check_branch
          %486 = sbr.rel (%p484) target = $region52
        $region51: #{tpu_custom_call.1} parent=11 // pred_region
          %s488 = ssub.s32 128, 128
          %489 = vsyncadd [#allocation19], %s488
          %s491 = sshll.u32 [#allocation27], 4
          %s492 = int_to_ptr.vmem [resolvable:$true] %s491
          %494 = dma.hbm_to_vmem [thread:$0]  %s12, 128, %s492, [#allocation19]
        $region52: #{tpu_custom_call.1} parent=11 // pred_fallthru
          _
      $region12: #{tpu_custom_call.1} parent=5 // pred_fallthru
        _
      %p495 = scmp.lt.s32.totalorder %s28, 4
      // Predicated region
      $region53: #{tpu_custom_call.1} parent=5 // pred_check
        %p496 = pneg %p495
      $region54: #{tpu_custom_call.1} parent=5 // pred_check_branch
        %498 = sbr.rel (%p496) target = $region56
      $region55: #{tpu_custom_call.1} parent=5 // pred_region
        // Predicated region
        $region57: #{tpu_custom_call.1} parent=55 // pred_check
          %p499 = pneg %p174
        $region58: #{tpu_custom_call.1} parent=55 // pred_check_branch
          %501 = sbr.rel (%p499) target = $region60
        $region59: #{tpu_custom_call.1} parent=55 // pred_region
          %s502 = sand.u32 %s28, 1
          %s503 = scalar_lea.sflag [#allocation19], %s502
          %s504 = sand.u32 %s164, 1
          %s505 = smul.addr %s504, 16
          %s506 = scalar_lea.vmem [#allocation18], %s505
          %s508 = ssub.s32 256, 256
          %509 = vsyncadd %s503, %s508
          %s510 = smul.addr %s35, 2
          %s511 = sadd.s32 %s37, %s510
          %s512 = smul.addr %s511, 128
          %s513 = scalar_lea.hbm %s5, %s512
          %s514 = sshll.u32 %s506, 4
          %s515 = int_to_ptr.vmem [resolvable:$true] %s514
          %520 = dma.hbm_to_vmem [thread:$0]  %s513, 256, %s515, %s503, 128, 128, 8
        $region60: #{tpu_custom_call.1} parent=55 // pred_fallthru
          _
        // Predicated region
        $region61: #{tpu_custom_call.1} parent=55 // pred_check
          %p521 = pneg %p200
        $region62: #{tpu_custom_call.1} parent=55 // pred_check_branch
          %523 = sbr.rel (%p521) target = $region64
        $region63: #{tpu_custom_call.1} parent=55 // pred_region
          %s524 = sand.u32 %s28, 1
          %s525 = scalar_lea.sflag [#allocation19], %s524
          %s526 = sand.u32 %s190, 1
          %s527 = scalar_lea.vmem [#allocation20], %s526
          %s529 = ssub.s32 16, 16
          %530 = vsyncadd %s525, %s529
          %s531 = smul.addr %s35, 16
          %s532 = scalar_lea.hbm %s6, %s531
          %s534 = sshll.u32 %s527, 4
          %s535 = int_to_ptr.vmem [resolvable:$true] %s534
          %537 = dma.hbm_to_vmem [thread:$0]  %s532, 16, %s535, %s525
        $region64: #{tpu_custom_call.1} parent=55 // pred_fallthru
          _
        // Predicated region
        $region65: #{tpu_custom_call.1} parent=55 // pred_check
          %p538 = pneg %p247
        $region66: #{tpu_custom_call.1} parent=55 // pred_check_branch
          %540 = sbr.rel (%p538) target = $region68
        $region67: #{tpu_custom_call.1} parent=55 // pred_region
          %s541 = sand.u32 %s28, 1
          %s542 = scalar_lea.sflag [#allocation9], %s541
          %s543 = sand.u32 %s237, 1
          %s544 = smul.addr %s543, 32
          %s545 = scalar_lea.vmem [#allocation23], %s544
          %s547 = ssub.s32 512, 512
          %548 = vsyncadd %s542, %s547
          %s549 = smul.addr %s36, 4
          %s550 = smul.addr %s549, 128
          %s551 = scalar_lea.hbm %s8, %s550
          %s552 = sshll.u32 %s545, 4
          %s553 = int_to_ptr.vmem [resolvable:$true] %s552
          %558 = dma.hbm_to_vmem [thread:$0]  %s551, 512, %s553, %s542, 128, 128, 8
        $region68: #{tpu_custom_call.1} parent=55 // pred_fallthru
          _
      $region56: #{tpu_custom_call.1} parent=5 // pred_fallthru
        _
      %p559 = scmp.le.s32.totalorder 1, %s28
      %p560 = scmp.lt.s32.totalorder %s28, 5
      %p561 = pnand %p559, %p560
      %p562 = pneg %p561
      // Predicated region
      $region69: #{tpu_custom_call.1} parent=5 // pred_check
        _
      $region70: #{tpu_custom_call.1} parent=5 // pred_check_branch
        %564 = sbr.rel (%p561) target = $region72
      $region71: #{tpu_custom_call.1} parent=5 // pred_region
        %s565 = ssub.s32 %s28, 1
        // Predicated region
        $region73: #{tpu_custom_call.1} parent=71 // pred_check
          %p566 = pneg %p68
        $region74: #{tpu_custom_call.1} parent=71 // pred_check_branch
          %568 = sbr.rel (%p566) target = $region76
        $region75: #{tpu_custom_call.1} parent=71 // pred_region
          %569 = dma.done [#allocation9], 256
        $region76: #{tpu_custom_call.1} parent=71 // pred_fallthru
          _
        // Predicated region
        $region77: #{tpu_custom_call.1} parent=71 // pred_check
          %p570 = pneg %p89
        $region78: #{tpu_custom_call.1} parent=71 // pred_check_branch
          %572 = sbr.rel (%p570) target = $region80
        $region79: #{tpu_custom_call.1} parent=71 // pred_region
          %573 = dma.done [#allocation13], 512
        $region80: #{tpu_custom_call.1} parent=71 // pred_fallthru
          _
        // Predicated region
        $region81: #{tpu_custom_call.1} parent=71 // pred_check
          %p574 = pneg %p110
        $region82: #{tpu_custom_call.1} parent=71 // pred_check_branch
          %576 = sbr.rel (%p574) target = $region84
        $region83: #{tpu_custom_call.1} parent=71 // pred_region
          %577 = dma.done [#allocation13], 512
        $region84: #{tpu_custom_call.1} parent=71 // pred_fallthru
          _
        // Predicated region
        $region85: #{tpu_custom_call.1} parent=71 // pred_check
          %p578 = pneg %p131
        $region86: #{tpu_custom_call.1} parent=71 // pred_check_branch
          %580 = sbr.rel (%p578) target = $region88
        $region87: #{tpu_custom_call.1} parent=71 // pred_region
          %581 = dma.done [#allocation16], 512
        $region88: #{tpu_custom_call.1} parent=71 // pred_fallthru
          _
        // Predicated region
        $region89: #{tpu_custom_call.1} parent=71 // pred_check
          %p582 = pneg %p152
        $region90: #{tpu_custom_call.1} parent=71 // pred_check_branch
          %584 = sbr.rel (%p582) target = $region92
        $region91: #{tpu_custom_call.1} parent=71 // pred_region
          %585 = dma.done [#allocation16], 512
        $region92: #{tpu_custom_call.1} parent=71 // pred_fallthru
          _
        %s586 = sand.u32 %s33, 1
        %s587 = scalar_lea.sflag [#allocation19], %s586
        %s588 = sand.u32 %s167, 1
        %s589 = smul.addr %s588, 16
        %s590 = scalar_lea.vmem [#allocation18], %s589
        // Predicated region
        $region93: #{tpu_custom_call.1} parent=71 // pred_check
          %p591 = pneg %p180
        $region94: #{tpu_custom_call.1} parent=71 // pred_check_branch
          %593 = sbr.rel (%p591) target = $region96
        $region95: #{tpu_custom_call.1} parent=71 // pred_region
          %594 = dma.done %s587, 256
        $region96: #{tpu_custom_call.1} parent=71 // pred_fallthru
          _
        %s595 = sand.u32 %s33, 1
        %s596 = scalar_lea.sflag [#allocation19], %s595
        %s597 = sand.u32 %s193, 1
        %s598 = scalar_lea.vmem [#allocation20], %s597
        // Predicated region
        $region97: #{tpu_custom_call.1} parent=71 // pred_check
          %p599 = pneg %p206
        $region98: #{tpu_custom_call.1} parent=71 // pred_check_branch
          %601 = sbr.rel (%p599) target = $region100
        $region99: #{tpu_custom_call.1} parent=71 // pred_region
          %602 = dma.done %s596, 16
        $region100: #{tpu_custom_call.1} parent=71 // pred_fallthru
          _
        // Predicated region
        $region101: #{tpu_custom_call.1} parent=71 // pred_check
          %p603 = pneg %p227
        $region102: #{tpu_custom_call.1} parent=71 // pred_check_branch
          %605 = sbr.rel (%p603) target = $region104
        $region103: #{tpu_custom_call.1} parent=71 // pred_region
          %606 = dma.done [#allocation22], 512
        $region104: #{tpu_custom_call.1} parent=71 // pred_fallthru
          _
        %s607 = sand.u32 %s33, 1
        %s608 = scalar_lea.sflag [#allocation9], %s607
        %s609 = sand.u32 %s240, 1
        %s610 = smul.addr %s609, 32
        %s611 = scalar_lea.vmem [#allocation23], %s610
        // Predicated region
        $region105: #{tpu_custom_call.1} parent=71 // pred_check
          %p612 = pneg %p253
        $region106: #{tpu_custom_call.1} parent=71 // pred_check_branch
          %614 = sbr.rel (%p612) target = $region108
        $region107: #{tpu_custom_call.1} parent=71 // pred_region
          %615 = dma.done %s608, 512
        $region108: #{tpu_custom_call.1} parent=71 // pred_fallthru
          _
        // Predicated region
        $region109: #{tpu_custom_call.1} parent=71 // pred_check
          %p616 = pneg %p274
        $region110: #{tpu_custom_call.1} parent=71 // pred_check_branch
          %618 = sbr.rel (%p616) target = $region112
        $region111: #{tpu_custom_call.1} parent=71 // pred_region
          %619 = dma.done [#allocation13], 512
        $region112: #{tpu_custom_call.1} parent=71 // pred_fallthru
          _
        // Predicated region
        $region113: #{tpu_custom_call.1} parent=71 // pred_check
          %p620 = pneg %p295
        $region114: #{tpu_custom_call.1} parent=71 // pred_check_branch
          %622 = sbr.rel (%p620) target = $region116
        $region115: #{tpu_custom_call.1} parent=71 // pred_region
          %623 = dma.done [#allocation11], 16
        $region116: #{tpu_custom_call.1} parent=71 // pred_fallthru
          _
        // Predicated region
        $region117: #{tpu_custom_call.1} parent=71 // pred_check
          %p624 = pneg %p316
        $region118: #{tpu_custom_call.1} parent=71 // pred_check_branch
          %626 = sbr.rel (%p624) target = $region120
        $region119: #{tpu_custom_call.1} parent=71 // pred_region
          %627 = dma.done [#allocation16], 128
        $region120: #{tpu_custom_call.1} parent=71 // pred_fallthru
          _
        // Predicated region
        $region121: #{tpu_custom_call.1} parent=71 // pred_check
          %p628 = pneg %p337
        $region122: #{tpu_custom_call.1} parent=71 // pred_check_branch
          %630 = sbr.rel (%p628) target = $region124
        $region123: #{tpu_custom_call.1} parent=71 // pred_region
          %631 = dma.done [#allocation19], 128
        $region124: #{tpu_custom_call.1} parent=71 // pred_fallthru
          _
        %632 = sfence
        %p633 = pneg %p68
        %p634 = pneg %p65
        %p635 = pneg %p89
        %p636 = pneg %p86
        %p637 = pneg %p110
        %p638 = pneg %p107
        %p639 = pneg %p131
        %p640 = pneg %p128
        %p641 = pneg %p152
        %p642 = pneg %p149
        %s643 = sand.u32 %s33, 1
        %s644 = scalar_lea.sflag [#allocation19], %s643
        %s645 = sand.u32 %s167, 1
        %s646 = smul.addr %s645, 16
        %s647 = scalar_lea.vmem [#allocation18], %s646
        %p648 = pneg %p180
        %p649 = pneg %p177
        %s650 = sand.u32 %s33, 1
        %s651 = scalar_lea.sflag [#allocation19], %s650
        %s652 = sand.u32 %s193, 1
        %s653 = scalar_lea.vmem [#allocation20], %s652
        %p654 = pneg %p206
        %p655 = pneg %p203
        %p656 = pneg %p227
        %p657 = pneg %p224
        %s658 = sand.u32 %s33, 1
        %s659 = scalar_lea.sflag [#allocation9], %s658
        %s660 = sand.u32 %s240, 1
        %s661 = smul.addr %s660, 32
        %s662 = scalar_lea.vmem [#allocation23], %s661
        %p663 = pneg %p253
        %p664 = pneg %p250
        %p665 = pneg %p274
        %p666 = pneg %p271
        %p667 = pneg %p295
        %p668 = pneg %p292
        %p669 = pneg %p316
        %p670 = pneg %p313
        %p671 = pneg %p337
        %p672 = pneg %p334
        %p673 = pneg %p358
        %p674 = pneg %p355
        %v676 = vld [vmem:[%s598] sm:$0x1]
        %p677 = scmp.eq.s32.totalorder %s38, 0
        %p678 = scmp.eq.s32.totalorder %s39, 0
        %p679 = pnand %p677, %p678
        %p680 = pneg %p679
        %p681 = scmp.eq.s32.totalorder %s40, 0
        %p682 = pnand %p680, %p681
        %p683 = pneg %p682
        // Predicated region
        $region125: #{tpu_custom_call.1} parent=71 // pred_check
          _
        $region126: #{tpu_custom_call.1} parent=71 // pred_check_branch
          %685 = sbr.rel (%p682) target = $region128
        $region127: #{tpu_custom_call.1} parent=71 // pred_region
          %v686 = vld [vmem:[#allocation12] sm:$0xff]
          %v687 = vld [vmem:[#allocation12 + $0x8] sm:$0xff]
          %v688 = vld [vmem:[#allocation12 + $0x10] sm:$0xff]
          %v689 = vld [vmem:[#allocation12 + $0x18] sm:$0xff]
          %v690 = vld [vmem:[#allocation8] sm:$0xff]
          %v691 = vld [vmem:[#allocation8 + $0x8] sm:$0xff]
          %v692 = vld [vmem:[#allocation14] sm:$0xff]
          %v693 = vld [vmem:[#allocation14 + $0x8] sm:$0xff]
          %v694 = vld [vmem:[#allocation14 + $0x10] sm:$0xff]
          %v695 = vld [vmem:[#allocation14 + $0x18] sm:$0xff]
          %697 = vset.pattern.permute.xlu0 0
          %698 = vperm.xlu0 %697, %v692
          %v699 = vpop.permute.xlu0 %698
          %702 = vset.pattern.permute.xlu0 0
          %703 = vperm.xlu0 %702, %v693
          %v704 = vpop.permute.xlu0 %703
          %707 = vset.pattern.permute.xlu0 0
          %708 = vperm.xlu0 %707, %v694
          %v709 = vpop.permute.xlu0 %708
          %712 = vset.pattern.permute.xlu0 0
          %713 = vperm.xlu0 %712, %v695
          %v714 = vpop.permute.xlu0 %713
          %vm716 = vcmask 130048
          %v718 = vsel %vm716, %v686, 0
          %v721 = vsel %vm716, %v687, 0
          %v724 = vsel %vm716, %v688, 0
          %v727 = vsel %vm716, %v689, 0
          %729 = vmatprep.subr.mxu0 0.0
          %730 = vmatpush1.msra.mxu0 %v690
          %731 = vmatprep.subr.mxu0 0.0
          %732 = vmatpush1.msra.mxu0 %v691
          %733 = vmatprep.subr.mxu0 0.0
          %734 = vmatpush1.msra.mxu0 0.0
          %735 = vmatprep.subr.mxu0 0.0
          %736 = vmatpush1.msra.mxu0 0.0
          %737 = vmatprep.subr.mxu0 0.0
          %738 = vmatpush1.msra.mxu0 0.0
          %739 = vmatprep.subr.mxu0 0.0
          %740 = vmatpush1.msra.mxu0 0.0
          %741 = vmatprep.subr.mxu0 0.0
          %742 = vmatpush1.msra.mxu0 0.0
          %743 = vmatprep.subr.mxu0 0.0
          %744 = vmatpush1.msra.mxu0 0.0
          %745 = vmatprep.subr.mxu0 0.0
          %746 = vmatpush1.msra.mxu0 0.0
          %747 = vmatprep.subr.mxu0 0.0
          %748 = vmatpush1.msra.mxu0 0.0
          %749 = vmatprep.subr.mxu0 0.0
          %750 = vmatpush1.msra.mxu0 0.0
          %751 = vmatprep.subr.mxu0 0.0
          %752 = vmatpush1.msra.mxu0 0.0
          %753 = vmatprep.subr.mxu0 0.0
          %754 = vmatpush1.msra.mxu0 0.0
          %755 = vmatprep.subr.mxu0 0.0
          %756 = vmatpush1.msra.mxu0 0.0
          %757 = vmatprep.subr.mxu0 0.0
          %758 = vmatpush1.msra.mxu0 0.0
          %759 = vmatprep.subr.mxu0 0.0
          %760 = vmatpush1.msra.mxu0 0.0
          %761 = vmatprep.subr.mxu0 0.0
          %762 = vmatpush1.msra.mxu0 0.0
          %763 = vmatprep.subr.mxu0 0.0
          %764 = vmatpush1.msra.mxu0 0.0
          %765 = vmatprep.subr.mxu0 0.0
          %766 = vmatpush1.msra.mxu0 0.0
          %767 = vmatprep.subr.mxu0 0.0
          %768 = vmatpush1.msra.mxu0 0.0
          %769 = vmatprep.subr.mxu0 0.0
          %770 = vmatpush1.msra.mxu0 0.0
          %771 = vmatprep.subr.mxu0 0.0
          %772 = vmatpush1.msra.mxu0 0.0
          %773 = vmatprep.subr.mxu0 0.0
          %774 = vmatpush1.msra.mxu0 0.0
          %775 = vmatprep.subr.mxu0 0.0
          %776 = vmatpush1.msra.mxu0 0.0
          %777 = vmatprep.subr.mxu0 0.0
          %778 = vmatpush1.msra.mxu0 0.0
          %779 = vmatprep.subr.mxu0 0.0
          %780 = vmatpush1.msra.mxu0 0.0
          %781 = vmatprep.subr.mxu0 0.0
          %782 = vmatpush1.msra.mxu0 0.0
          %783 = vmatprep.subr.mxu0 0.0
          %784 = vmatpush1.msra.mxu0 0.0
          %785 = vmatprep.subr.mxu0 0.0
          %786 = vmatpush1.msra.mxu0 0.0
          %787 = vmatprep.subr.mxu0 0.0
          %788 = vmatpush1.msra.mxu0 0.0
          %789 = vmatprep.subr.mxu0 0.0
          %790 = vmatpush1.msra.mxu0 0.0
          %791 = vmatprep.subr.mxu0 0.0
          %792 = vmatpush1.msra.mxu0 0.0
          %793 = vmatprep.mubr.f32.mxu0 0.0
          %794 = vmatmul.mubr.f32.gmra.mrb[0].mxu0 %v718
          %v795 = vpop.f32.mrb[0].mxu0
          %v796 = vadd.f32 %v699, %v795
          %v797 = vpop.f32.mrb[0].mxu0
          %798 = vmatprep.mubr.f32.mxu0 0.0
          %799 = vmatmul.mubr.f32.gmra.mrb[0].mxu0 %v721
          %v800 = vpop.f32.mrb[0].mxu0
          %v801 = vadd.f32 %v704, %v800
          %v802 = vpop.f32.mrb[0].mxu0
          %803 = vmatprep.mubr.f32.mxu0 0.0
          %804 = vmatmul.mubr.f32.gmra.mrb[0].mxu0 %v724
          %v805 = vpop.f32.mrb[0].mxu0
          %v806 = vadd.f32 %v709, %v805
          %v807 = vpop.f32.mrb[0].mxu0
          %808 = vmatprep.mubr.f32.mxu0 0.0
          %809 = vmatmul.mubr.f32.gmra.mrb[0].mxu0 %v727
          %v810 = vpop.f32.mrb[0].mxu0
          %v811 = vadd.f32 %v714, %v810
          %v812 = vpop.f32.mrb[0].mxu0
          %813 = vdwg.mxu0
          %v814 = vmax.f32 %v796, 0.0
          %v815 = vmax.f32 %v801, 0.0
          %v816 = vmax.f32 %v806, 0.0
          %v817 = vmax.f32 %v811, 0.0
          %v818 = vld [vmem:[#allocation15] sm:$0xff]
          %v819 = vld [vmem:[#allocation15 + $0x8] sm:$0xff]
          %v820 = vld [vmem:[#allocation15 + $0x10] sm:$0xff]
          %v821 = vld [vmem:[#allocation15 + $0x18] sm:$0xff]
          %v822 = vld [vmem:[#allocation17] sm:$0xff]
          %v823 = vld [vmem:[#allocation17 + $0x8] sm:$0xff]
          %v824 = vld [vmem:[#allocation17 + $0x10] sm:$0xff]
          %v825 = vld [vmem:[#allocation17 + $0x18] sm:$0xff]
          %827 = vset.pattern.permute.xlu0 0
          %828 = vperm.xlu0 %827, %v822
          %v829 = vpop.permute.xlu0 %828
          %832 = vset.pattern.permute.xlu0 0
          %833 = vperm.xlu0 %832, %v823
          %v834 = vpop.permute.xlu0 %833
          %837 = vset.pattern.permute.xlu0 0
          %838 = vperm.xlu0 %837, %v824
          %v839 = vpop.permute.xlu0 %838
          %842 = vset.pattern.permute.xlu0 0
          %843 = vperm.xlu0 %842, %v825
          %v844 = vpop.permute.xlu0 %843
          %vm846 = vcmask 261120
          %v848 = vsel %vm846, %v818, 0
          %v851 = vsel %vm846, %v819, 0
          %v854 = vsel %vm846, %v820, 0
          %v857 = vsel %vm846, %v821, 0
          %859 = vmatprep.subr.mxu0 0.0
          %860 = vmatpush1.msra.mxu0 %v814
          %861 = vmatprep.subr.mxu0 0.0
          %862 = vmatpush1.msra.mxu0 %v815
          %863 = vmatprep.subr.mxu0 0.0
          %864 = vmatpush1.msra.mxu0 %v816
          %865 = vmatprep.subr.mxu0 0.0
          %866 = vmatpush1.msra.mxu0 %v817
          %867 = vmatprep.subr.mxu0 0.0
          %868 = vmatpush1.msra.mxu0 0.0
          %869 = vmatprep.subr.mxu0 0.0
          %870 = vmatpush1.msra.mxu0 0.0
          %871 = vmatprep.subr.mxu0 0.0
          %872 = vmatpush1.msra.mxu0 0.0
          %873 = vmatprep.subr.mxu0 0.0
          %874 = vmatpush1.msra.mxu0 0.0
          %875 = vmatprep.subr.mxu0 0.0
          %876 = vmatpush1.msra.mxu0 0.0
          %877 = vmatprep.subr.mxu0 0.0
          %878 = vmatpush1.msra.mxu0 0.0
          %879 = vmatprep.subr.mxu0 0.0
          %880 = vmatpush1.msra.mxu0 0.0
          %881 = vmatprep.subr.mxu0 0.0
          %882 = vmatpush1.msra.mxu0 0.0
          %883 = vmatprep.subr.mxu0 0.0
          %884 = vmatpush1.msra.mxu0 0.0
          %885 = vmatprep.subr.mxu0 0.0
          %886 = vmatpush1.msra.mxu0 0.0
          %887 = vmatprep.subr.mxu0 0.0
          %888 = vmatpush1.msra.mxu0 0.0
          %889 = vmatprep.subr.mxu0 0.0
          %890 = vmatpush1.msra.mxu0 0.0
          %891 = vmatprep.subr.mxu0 0.0
          %892 = vmatpush1.msra.mxu0 0.0
          %893 = vmatprep.subr.mxu0 0.0
          %894 = vmatpush1.msra.mxu0 0.0
          %895 = vmatprep.subr.mxu0 0.0
          %896 = vmatpush1.msra.mxu0 0.0
          %897 = vmatprep.subr.mxu0 0.0
          %898 = vmatpush1.msra.mxu0 0.0
          %899 = vmatprep.subr.mxu0 0.0
          %900 = vmatpush1.msra.mxu0 0.0
          %901 = vmatprep.subr.mxu0 0.0
          %902 = vmatpush1.msra.mxu0 0.0
          %903 = vmatprep.subr.mxu0 0.0
          %904 = vmatpush1.msra.mxu0 0.0
          %905 = vmatprep.subr.mxu0 0.0
          %906 = vmatpush1.msra.mxu0 0.0
          %907 = vmatprep.subr.mxu0 0.0
          %908 = vmatpush1.msra.mxu0 0.0
          %909 = vmatprep.subr.mxu0 0.0
          %910 = vmatpush1.msra.mxu0 0.0
          %911 = vmatprep.subr.mxu0 0.0
          %912 = vmatpush1.msra.mxu0 0.0
          %913 = vmatprep.subr.mxu0 0.0
          %914 = vmatpush1.msra.mxu0 0.0
          %915 = vmatprep.subr.mxu0 0.0
          %916 = vmatpush1.msra.mxu0 0.0
          %917 = vmatprep.subr.mxu0 0.0
          %918 = vmatpush1.msra.mxu0 0.0
          %919 = vmatprep.subr.mxu0 0.0
          %920 = vmatpush1.msra.mxu0 0.0
          %921 = vmatprep.subr.mxu0 0.0
          %922 = vmatpush1.msra.mxu0 0.0
          %923 = vmatprep.mubr.f32.mxu0 0.0
          %924 = vmatmul.mubr.f32.gmra.mrb[0].mxu0 %v848
          %v925 = vpop.f32.mrb[0].mxu0
          %v926 = vadd.f32 %v829, %v925
          %v927 = vpop.f32.mrb[0].mxu0
          %928 = vmatprep.mubr.f32.mxu0 0.0
          %929 = vmatmul.mubr.f32.gmra.mrb[0].mxu0 %v851
          %v930 = vpop.f32.mrb[0].mxu0
          %v931 = vadd.f32 %v834, %v930
          %v932 = vpop.f32.mrb[0].mxu0
          %933 = vmatprep.mubr.f32.mxu0 0.0
          %934 = vmatmul.mubr.f32.gmra.mrb[0].mxu0 %v854
          %v935 = vpop.f32.mrb[0].mxu0
          %v936 = vadd.f32 %v839, %v935
          %v937 = vpop.f32.mrb[0].mxu0
          %938 = vmatprep.mubr.f32.mxu0 0.0
          %939 = vmatmul.mubr.f32.gmra.mrb[0].mxu0 %v857
          %v940 = vpop.f32.mrb[0].mxu0
          %v941 = vadd.f32 %v844, %v940
          %v942 = vpop.f32.mrb[0].mxu0
          %943 = vdwg.mxu0
          %v944 = vmax.f32 %v926, 0.0
          %v945 = vmax.f32 %v931, 0.0
          %v946 = vmax.f32 %v936, 0.0
          %v947 = vmax.f32 %v941, 0.0
          %vm948 = vcmask 523264
          %949 = vst.msk [vmem:[#allocation2] sm:$0xff] %vm948, %v944
          %950 = vst.msk [vmem:[#allocation2 + $0x8] sm:$0xff] %vm948, %v945
          %951 = vst.msk [vmem:[#allocation2 + $0x10] sm:$0xff] %vm948, %v946
          %952 = vst.msk [vmem:[#allocation2 + $0x18] sm:$0xff] %vm948, %v947
          %953 = vst.msk [vmem:[#allocation3] sm:$0xff] %vm948, 0.0
          %954 = vst.msk [vmem:[#allocation3 + $0x8] sm:$0xff] %vm948, 0.0
          %955 = vst.msk [vmem:[#allocation3 + $0x10] sm:$0xff] %vm948, 0.0
          %956 = vst.msk [vmem:[#allocation3 + $0x18] sm:$0xff] %vm948, 0.0
        $region128: #{tpu_custom_call.1} parent=71 // pred_fallthru
          _
        %p957 = pnand %p678, %p681
        %p958 = pneg %p957
        // Predicated region
        $region129: #{tpu_custom_call.1} parent=71 // pred_check
          _
        $region130: #{tpu_custom_call.1} parent=71 // pred_check_branch
          %960 = sbr.rel (%p957) target = $region132
        $region131: #{tpu_custom_call.1} parent=71 // pred_region
          %v961 = vld [vmem:[#allocation2] sm:$0xff]
          %v962 = vld [vmem:[#allocation2 + $0x8] sm:$0xff]
          %v963 = vld [vmem:[#allocation2 + $0x10] sm:$0xff]
          %v964 = vld [vmem:[#allocation2 + $0x18] sm:$0xff]
          %vm965 = vcmask 523264
          %966 = vst.msk [vmem:[#allocation4] sm:$0xff] %vm965, %v961
          %967 = vst.msk [vmem:[#allocation4 + $0x8] sm:$0xff] %vm965, %v962
          %968 = vst.msk [vmem:[#allocation4 + $0x10] sm:$0xff] %vm965, %v963
          %969 = vst.msk [vmem:[#allocation4 + $0x18] sm:$0xff] %vm965, %v964
          %v970 = vld [vmem:[#allocation21] sm:$0xff]
          %v971 = vld [vmem:[#allocation21 + $0x8] sm:$0xff]
          %v972 = vld [vmem:[#allocation21 + $0x10] sm:$0xff]
          %v973 = vld [vmem:[#allocation21 + $0x18] sm:$0xff]
          %v974 = vld [vmem:[#allocation24] sm:$0xff]
          %v975 = vld [vmem:[#allocation24 + $0x8] sm:$0xff]
          %v976 = vld [vmem:[#allocation24 + $0x10] sm:$0xff]
          %v977 = vld [vmem:[#allocation24 + $0x18] sm:$0xff]
          %979 = vset.pattern.permute.xlu0 0
          %980 = vperm.xlu0 %979, %v974
          %v981 = vpop.permute.xlu0 %980
          %984 = vset.pattern.permute.xlu0 0
          %985 = vperm.xlu0 %984, %v975
          %v986 = vpop.permute.xlu0 %985
          %989 = vset.pattern.permute.xlu0 0
          %990 = vperm.xlu0 %989, %v976
          %v991 = vpop.permute.xlu0 %990
          %994 = vset.pattern.permute.xlu0 0
          %995 = vperm.xlu0 %994, %v977
          %v996 = vpop.permute.xlu0 %995
          %vm998 = vcmask 261120
          %v1000 = vsel %vm998, %v970, 0
          %v1003 = vsel %vm998, %v971, 0
          %v1006 = vsel %vm998, %v972, 0
          %v1009 = vsel %vm998, %v973, 0
          %1011 = vmatprep.subr.mxu0 0.0
          %1012 = vmatpush1.msra.mxu0 %v961
          %1013 = vmatprep.subr.mxu0 0.0
          %1014 = vmatpush1.msra.mxu0 %v962
          %1015 = vmatprep.subr.mxu0 0.0
          %1016 = vmatpush1.msra.mxu0 %v963
          %1017 = vmatprep.subr.mxu0 0.0
          %1018 = vmatpush1.msra.mxu0 %v964
          %1019 = vmatprep.subr.mxu0 0.0
          %1020 = vmatpush1.msra.mxu0 0.0
          %1021 = vmatprep.subr.mxu0 0.0
          %1022 = vmatpush1.msra.mxu0 0.0
          %1023 = vmatprep.subr.mxu0 0.0
          %1024 = vmatpush1.msra.mxu0 0.0
          %1025 = vmatprep.subr.mxu0 0.0
          %1026 = vmatpush1.msra.mxu0 0.0
          %1027 = vmatprep.subr.mxu0 0.0
          %1028 = vmatpush1.msra.mxu0 0.0
          %1029 = vmatprep.subr.mxu0 0.0
          %1030 = vmatpush1.msra.mxu0 0.0
          %1031 = vmatprep.subr.mxu0 0.0
          %1032 = vmatpush1.msra.mxu0 0.0
          %1033 = vmatprep.subr.mxu0 0.0
          %1034 = vmatpush1.msra.mxu0 0.0
          %1035 = vmatprep.subr.mxu0 0.0
          %1036 = vmatpush1.msra.mxu0 0.0
          %1037 = vmatprep.subr.mxu0 0.0
          %1038 = vmatpush1.msra.mxu0 0.0
          %1039 = vmatprep.subr.mxu0 0.0
          %1040 = vmatpush1.msra.mxu0 0.0
          %1041 = vmatprep.subr.mxu0 0.0
          %1042 = vmatpush1.msra.mxu0 0.0
          %1043 = vmatprep.subr.mxu0 0.0
          %1044 = vmatpush1.msra.mxu0 0.0
          %1045 = vmatprep.subr.mxu0 0.0
          %1046 = vmatpush1.msra.mxu0 0.0
          %1047 = vmatprep.subr.mxu0 0.0
          %1048 = vmatpush1.msra.mxu0 0.0
          %1049 = vmatprep.subr.mxu0 0.0
          %1050 = vmatpush1.msra.mxu0 0.0
          %1051 = vmatprep.subr.mxu0 0.0
          %1052 = vmatpush1.msra.mxu0 0.0
          %1053 = vmatprep.subr.mxu0 0.0
          %1054 = vmatpush1.msra.mxu0 0.0
          %1055 = vmatprep.subr.mxu0 0.0
          %1056 = vmatpush1.msra.mxu0 0.0
          %1057 = vmatprep.subr.mxu0 0.0
          %1058 = vmatpush1.msra.mxu0 0.0
          %1059 = vmatprep.subr.mxu0 0.0
          %1060 = vmatpush1.msra.mxu0 0.0
          %1061 = vmatprep.subr.mxu0 0.0
          %1062 = vmatpush1.msra.mxu0 0.0
          %1063 = vmatprep.subr.mxu0 0.0
          %1064 = vmatpush1.msra.mxu0 0.0
          %1065 = vmatprep.subr.mxu0 0.0
          %1066 = vmatpush1.msra.mxu0 0.0
          %1067 = vmatprep.subr.mxu0 0.0
          %1068 = vmatpush1.msra.mxu0 0.0
          %1069 = vmatprep.subr.mxu0 0.0
          %1070 = vmatpush1.msra.mxu0 0.0
          %1071 = vmatprep.subr.mxu0 0.0
          %1072 = vmatpush1.msra.mxu0 0.0
          %1073 = vmatprep.subr.mxu0 0.0
          %1074 = vmatpush1.msra.mxu0 0.0
          %1075 = vmatprep.mubr.f32.mxu0 0.0
          %1076 = vmatmul.mubr.f32.gmra.mrb[0].mxu0 %v1000
          %v1077 = vpop.f32.mrb[0].mxu0
          %v1078 = vadd.f32 %v981, %v1077
          %v1079 = vpop.f32.mrb[0].mxu0
          %1080 = vmatprep.mubr.f32.mxu0 0.0
          %1081 = vmatmul.mubr.f32.gmra.mrb[0].mxu0 %v1003
          %v1082 = vpop.f32.mrb[0].mxu0
          %v1083 = vadd.f32 %v986, %v1082
          %v1084 = vpop.f32.mrb[0].mxu0
          %1085 = vmatprep.mubr.f32.mxu0 0.0
          %1086 = vmatmul.mubr.f32.gmra.mrb[0].mxu0 %v1006
          %v1087 = vpop.f32.mrb[0].mxu0
          %v1088 = vadd.f32 %v991, %v1087
          %v1089 = vpop.f32.mrb[0].mxu0
          %1090 = vmatprep.mubr.f32.mxu0 0.0
          %1091 = vmatmul.mubr.f32.gmra.mrb[0].mxu0 %v1009
          %v1092 = vpop.f32.mrb[0].mxu0
          %v1093 = vadd.f32 %v996, %v1092
          %v1094 = vpop.f32.mrb[0].mxu0
          %1095 = vdwg.mxu0
          %1096 = vst.msk [vmem:[#allocation7] sm:$0xff] %vm965, %v1078
          %1097 = vst.msk [vmem:[#allocation7 + $0x8] sm:$0xff] %vm965, %v1083
          %1098 = vst.msk [vmem:[#allocation7 + $0x10] sm:$0xff] %vm965, %v1088
          %1099 = vst.msk [vmem:[#allocation7 + $0x18] sm:$0xff] %vm965, %v1093
        $region132: #{tpu_custom_call.1} parent=71 // pred_fallthru
          _
        // Predicated region
        $region133: #{tpu_custom_call.1} parent=71 // pred_check
          %p1100 = pneg %p681
        $region134: #{tpu_custom_call.1} parent=71 // pred_check_branch
          %1102 = sbr.rel (%p1100) target = $region136
        $region135: #{tpu_custom_call.1} parent=71 // pred_region
          %v1103 = vld [vmem:[#allocation4] sm:$0xff]
          %v1104 = vld [vmem:[#allocation4 + $0x8] sm:$0xff]
          %v1105 = vld [vmem:[#allocation4 + $0x10] sm:$0xff]
          %v1106 = vld [vmem:[#allocation4 + $0x18] sm:$0xff]
          %v1108 = vlaneseq
          %v1109 = vshrl.u32 %v1108, 7
          %v1110 = vsub.s32 0, %v1109
          %v1111 = vrot.slane %v676, %v1110
          %v1113 = vmul.f32 %v1103, %v1111
          %v1114 = vmul.f32 %v1104, %v1111
          %v1115 = vmul.f32 %v1105, %v1111
          %v1116 = vmul.f32 %v1106, %v1111
          %v1117 = vpack.c.bf16 %v1114, %v1113
          %v1118 = vpack.c.bf16 %v1116, %v1115
          %vm1119 = vcmask 523264
          %1120 = vst.msk [vmem:[#allocation5] sm:$0xff] %vm1119, %v1117
          %1121 = vst.msk [vmem:[#allocation5 + $0x8] sm:$0xff] %vm1119, %v1118
        $region136: #{tpu_custom_call.1} parent=71 // pred_fallthru
          _
        %v1122 = vld [vmem:[%s590] sm:$0xff]
        %v1123 = vld [vmem:[%s590 + $0x8] sm:$0xff]
        %v1124 = vunpack.c.l.s8.bf16 %v1122
        %v1125 = vunpack.c.h.s8.bf16 %v1122
        %v1126 = vunpack.c.l.s8.bf16 %v1123
        %v1127 = vunpack.c.h.s8.bf16 %v1123
        %v1128 = vld [vmem:[#allocation5] sm:$0xff]
        %v1129 = vld [vmem:[#allocation5 + $0x8] sm:$0xff]
        %vm1130 = vcmask 523264
        %v1132 = vsel %vm1130, %v1128, 0
        %v1135 = vsel %vm1130, %v1129, 0
        %1137 = vmatprep.subr.bf16.mxu0 0
        %1138 = vmatpush1.bf16.msra.mxu0 %v1124
        %1139 = vmatprep.subr.bf16.mxu0 0
        %1140 = vmatpush1.bf16.msra.mxu0 %v1125
        %1141 = vmatprep.subr.bf16.mxu0 0
        %1142 = vmatpush1.bf16.msra.mxu0 %v1126
        %1143 = vmatprep.subr.bf16.mxu0 0
        %1144 = vmatpush1.bf16.msra.mxu0 %v1127
        %1145 = vmatprep.subr.bf16.mxu0 0
        %1146 = vmatpush1.bf16.msra.mxu0 0
        %1147 = vmatprep.subr.bf16.mxu0 0
        %1148 = vmatpush1.bf16.msra.mxu0 0
        %1149 = vmatprep.subr.bf16.mxu0 0
        %1150 = vmatpush1.bf16.msra.mxu0 0
        %1151 = vmatprep.subr.bf16.mxu0 0
        %1152 = vmatpush1.bf16.msra.mxu0 0
        %1153 = vmatprep.subr.bf16.mxu0 0
        %1154 = vmatpush1.bf16.msra.mxu0 0
        %1155 = vmatprep.subr.bf16.mxu0 0
        %1156 = vmatpush1.bf16.msra.mxu0 0
        %1157 = vmatprep.subr.bf16.mxu0 0
        %1158 = vmatpush1.bf16.msra.mxu0 0
        %1159 = vmatprep.subr.bf16.mxu0 0
        %1160 = vmatpush1.bf16.msra.mxu0 0
        %1161 = vmatprep.subr.bf16.mxu0 0
        %1162 = vmatpush1.bf16.msra.mxu0 0
        %1163 = vmatprep.subr.bf16.mxu0 0
        %1164 = vmatpush1.bf16.msra.mxu0 0
        %1165 = vmatprep.subr.bf16.mxu0 0
        %1166 = vmatpush1.bf16.msra.mxu0 0
        %1167 = vmatprep.subr.bf16.mxu0 0
        %1168 = vmatpush1.bf16.msra.mxu0 0
        %1169 = vmatprep.mubr.bf16.mxu0 0
        %1170 = vmatmul.mubr.bf16.gmra.mrb[0].mxu0 %v1132
        %v1171 = vpop.f32.mrb[0].mxu0
        %v1172 = vadd.f32 0.0, %v1171
        %v1173 = vpop.f32.mrb[0].mxu0
        %v1174 = vpop.f32.mrb[0].mxu0
        %v1175 = vadd.f32 0.0, %v1174
        %v1176 = vpop.f32.mrb[0].mxu0
        %1177 = vmatprep.mubr.bf16.mxu0 0
        %1178 = vmatmul.mubr.bf16.gmra.mrb[0].mxu0 %v1135
        %v1179 = vpop.f32.mrb[0].mxu0
        %v1180 = vadd.f32 0.0, %v1179
        %v1181 = vpop.f32.mrb[0].mxu0
        %v1182 = vpop.f32.mrb[0].mxu0
        %v1183 = vadd.f32 0.0, %v1182
        %v1184 = vpop.f32.mrb[0].mxu0
        %1185 = vdwg.mxu0
        %1186 = vst.msk [vmem:[#allocation6] sm:$0xff] %vm1130, %v1172
        %1187 = vst.msk [vmem:[#allocation6 + $0x8] sm:$0xff] %vm1130, %v1175
        %1188 = vst.msk [vmem:[#allocation6 + $0x10] sm:$0xff] %vm1130, %v1180
        %1189 = vst.msk [vmem:[#allocation6 + $0x18] sm:$0xff] %vm1130, %v1183
        // Predicated region
        $region137: #{tpu_custom_call.1} parent=71 // pred_check
          %p1190 = pneg %p681
        $region138: #{tpu_custom_call.1} parent=71 // pred_check_branch
          %1192 = sbr.rel (%p1190) target = $region140
        $region139: #{tpu_custom_call.1} parent=71 // pred_region
          %v1193 = vld [vmem:[#allocation4] sm:$0xff]
          %v1194 = vld [vmem:[#allocation4 + $0x8] sm:$0xff]
          %v1195 = vld [vmem:[#allocation4 + $0x10] sm:$0xff]
          %v1196 = vld [vmem:[#allocation4 + $0x18] sm:$0xff]
          %v1197 = vld [vmem:[#allocation6] sm:$0xff]
          %v1198 = vld [vmem:[#allocation6 + $0x8] sm:$0xff]
          %v1199 = vld [vmem:[#allocation6 + $0x10] sm:$0xff]
          %v1200 = vld [vmem:[#allocation6 + $0x18] sm:$0xff]
          %v1202 = vlaneseq
          %v1203 = vshrl.u32 %v1202, 7
          %v1204 = vsub.s32 0, %v1203
          %v1205 = vrot.slane %v676, %v1204
          %v1207 = vmul.f32 %v1205, %v1197
          %v1208 = vmul.f32 %v1205, %v1198
          %v1209 = vmul.f32 %v1205, %v1199
          %v1210 = vmul.f32 %v1205, %v1200
          %v1211 = vsub.f32 %v1193, %v1207
          %v1212 = vsub.f32 %v1194, %v1208
          %v1213 = vsub.f32 %v1195, %v1209
          %v1214 = vsub.f32 %v1196, %v1210
          %1215 = vst.msk [vmem:[#allocation4] sm:$0xff] %vm1130, %v1211
          %1216 = vst.msk [vmem:[#allocation4 + $0x8] sm:$0xff] %vm1130, %v1212
          %1217 = vst.msk [vmem:[#allocation4 + $0x10] sm:$0xff] %vm1130, %v1213
          %1218 = vst.msk [vmem:[#allocation4 + $0x18] sm:$0xff] %vm1130, %v1214
          %v1219 = vld [vmem:[#allocation7] sm:$0xff]
          %v1220 = vld [vmem:[#allocation7 + $0x8] sm:$0xff]
          %v1221 = vld [vmem:[#allocation7 + $0x10] sm:$0xff]
          %v1222 = vld [vmem:[#allocation7 + $0x18] sm:$0xff]
          %v1223 = vld [vmem:[%s611] sm:$0xff]
          %v1224 = vld [vmem:[%s611 + $0x8] sm:$0xff]
          %v1225 = vld [vmem:[%s611 + $0x10] sm:$0xff]
          %v1226 = vld [vmem:[%s611 + $0x18] sm:$0xff]
          %vm1227 = vcmask 261120
          %v1229 = vsel %vm1227, %v1223, 0
          %v1232 = vsel %vm1227, %v1224, 0
          %v1235 = vsel %vm1227, %v1225, 0
          %v1238 = vsel %vm1227, %v1226, 0
          %1240 = vmatprep.subr.mxu0 0.0
          %1241 = vmatpush1.msra.mxu0 %v1211
          %1242 = vmatprep.subr.mxu0 0.0
          %1243 = vmatpush1.msra.mxu0 %v1212
          %1244 = vmatprep.subr.mxu0 0.0
          %1245 = vmatpush1.msra.mxu0 %v1213
          %1246 = vmatprep.subr.mxu0 0.0
          %1247 = vmatpush1.msra.mxu0 %v1214
          %1248 = vmatprep.subr.mxu0 0.0
          %1249 = vmatpush1.msra.mxu0 0.0
          %1250 = vmatprep.subr.mxu0 0.0
          %1251 = vmatpush1.msra.mxu0 0.0
          %1252 = vmatprep.subr.mxu0 0.0
          %1253 = vmatpush1.msra.mxu0 0.0
          %1254 = vmatprep.subr.mxu0 0.0
          %1255 = vmatpush1.msra.mxu0 0.0
          %1256 = vmatprep.subr.mxu0 0.0
          %1257 = vmatpush1.msra.mxu0 0.0
          %1258 = vmatprep.subr.mxu0 0.0
          %1259 = vmatpush1.msra.mxu0 0.0
          %1260 = vmatprep.subr.mxu0 0.0
          %1261 = vmatpush1.msra.mxu0 0.0
          %1262 = vmatprep.subr.mxu0 0.0
          %1263 = vmatpush1.msra.mxu0 0.0
          %1264 = vmatprep.subr.mxu0 0.0
          %1265 = vmatpush1.msra.mxu0 0.0
          %1266 = vmatprep.subr.mxu0 0.0
          %1267 = vmatpush1.msra.mxu0 0.0
          %1268 = vmatprep.subr.mxu0 0.0
          %1269 = vmatpush1.msra.mxu0 0.0
          %1270 = vmatprep.subr.mxu0 0.0
          %1271 = vmatpush1.msra.mxu0 0.0
          %1272 = vmatprep.subr.mxu0 0.0
          %1273 = vmatpush1.msra.mxu0 0.0
          %1274 = vmatprep.subr.mxu0 0.0
          %1275 = vmatpush1.msra.mxu0 0.0
          %1276 = vmatprep.subr.mxu0 0.0
          %1277 = vmatpush1.msra.mxu0 0.0
          %1278 = vmatprep.subr.mxu0 0.0
          %1279 = vmatpush1.msra.mxu0 0.0
          %1280 = vmatprep.subr.mxu0 0.0
          %1281 = vmatpush1.msra.mxu0 0.0
          %1282 = vmatprep.subr.mxu0 0.0
          %1283 = vmatpush1.msra.mxu0 0.0
          %1284 = vmatprep.subr.mxu0 0.0
          %1285 = vmatpush1.msra.mxu0 0.0
          %1286 = vmatprep.subr.mxu0 0.0
          %1287 = vmatpush1.msra.mxu0 0.0
          %1288 = vmatprep.subr.mxu0 0.0
          %1289 = vmatpush1.msra.mxu0 0.0
          %1290 = vmatprep.subr.mxu0 0.0
          %1291 = vmatpush1.msra.mxu0 0.0
          %1292 = vmatprep.subr.mxu0 0.0
          %1293 = vmatpush1.msra.mxu0 0.0
          %1294 = vmatprep.subr.mxu0 0.0
          %1295 = vmatpush1.msra.mxu0 0.0
          %1296 = vmatprep.subr.mxu0 0.0
          %1297 = vmatpush1.msra.mxu0 0.0
          %1298 = vmatprep.subr.mxu0 0.0
          %1299 = vmatpush1.msra.mxu0 0.0
          %1300 = vmatprep.subr.mxu0 0.0
          %1301 = vmatpush1.msra.mxu0 0.0
          %1302 = vmatprep.subr.mxu0 0.0
          %1303 = vmatpush1.msra.mxu0 0.0
          %1304 = vmatprep.mubr.f32.mxu0 0.0
          %1305 = vmatmul.mubr.f32.gmra.mrb[0].mxu0 %v1229
          %v1306 = vpop.f32.mrb[0].mxu0
          %v1307 = vadd.f32 0.0, %v1306
          %v1308 = vpop.f32.mrb[0].mxu0
          %1309 = vmatprep.mubr.f32.mxu0 0.0
          %1310 = vmatmul.mubr.f32.gmra.mrb[0].mxu0 %v1232
          %v1311 = vpop.f32.mrb[0].mxu0
          %v1312 = vadd.f32 0.0, %v1311
          %v1313 = vpop.f32.mrb[0].mxu0
          %1314 = vmatprep.mubr.f32.mxu0 0.0
          %1315 = vmatmul.mubr.f32.gmra.mrb[0].mxu0 %v1235
          %v1316 = vpop.f32.mrb[0].mxu0
          %v1317 = vadd.f32 0.0, %v1316
          %v1318 = vpop.f32.mrb[0].mxu0
          %1319 = vmatprep.mubr.f32.mxu0 0.0
          %1320 = vmatmul.mubr.f32.gmra.mrb[0].mxu0 %v1238
          %v1321 = vpop.f32.mrb[0].mxu0
          %v1322 = vadd.f32 0.0, %v1321
          %v1323 = vpop.f32.mrb[0].mxu0
          %1324 = vdwg.mxu0
          %v1325 = vadd.f32 %v1219, %v1307
          %v1326 = vadd.f32 %v1220, %v1312
          %v1327 = vadd.f32 %v1221, %v1317
          %v1328 = vadd.f32 %v1222, %v1322
          %1329 = vst.msk [vmem:[#allocation7] sm:$0xff] %vm1130, %v1325
          %1330 = vst.msk [vmem:[#allocation7 + $0x8] sm:$0xff] %vm1130, %v1326
          %1331 = vst.msk [vmem:[#allocation7 + $0x10] sm:$0xff] %vm1130, %v1327
          %1332 = vst.msk [vmem:[#allocation7 + $0x18] sm:$0xff] %vm1130, %v1328
        $region140: #{tpu_custom_call.1} parent=71 // pred_fallthru
          _
        %p1333 = scmp.eq.s32.totalorder %s39, 1
        %p1334 = pnand %p1333, %p681
        %p1335 = pneg %p1334
        // Predicated region
        $region141: #{tpu_custom_call.1} parent=71 // pred_check
          _
        $region142: #{tpu_custom_call.1} parent=71 // pred_check_branch
          %1337 = sbr.rel (%p1334) target = $region144
        $region143: #{tpu_custom_call.1} parent=71 // pred_region
          %v1338 = vld [vmem:[#allocation7] sm:$0xff]
          %v1339 = vld [vmem:[#allocation7 + $0x8] sm:$0xff]
          %v1340 = vld [vmem:[#allocation7 + $0x10] sm:$0xff]
          %v1341 = vld [vmem:[#allocation7 + $0x18] sm:$0xff]
          %1342 = vst.msk [vmem:[#allocation2] sm:$0xff] %vm1130, %v1338
          %1343 = vst.msk [vmem:[#allocation2 + $0x8] sm:$0xff] %vm1130, %v1339
          %1344 = vst.msk [vmem:[#allocation2 + $0x10] sm:$0xff] %vm1130, %v1340
          %1345 = vst.msk [vmem:[#allocation2 + $0x18] sm:$0xff] %vm1130, %v1341
          %v1346 = vld [vmem:[#allocation3] sm:$0xff]
          %v1347 = vld [vmem:[#allocation3 + $0x8] sm:$0xff]
          %v1348 = vld [vmem:[#allocation3 + $0x10] sm:$0xff]
          %v1349 = vld [vmem:[#allocation3 + $0x18] sm:$0xff]
          %s1350 = sld [smem:[#allocation25 + %s38]]
          %v1351 = vstv %s1350
          %v1352 = vmul.f32 %v1351, %v1338
          %v1353 = vmul.f32 %v1351, %v1339
          %v1354 = vmul.f32 %v1351, %v1340
          %v1355 = vmul.f32 %v1351, %v1341
          %v1356 = vadd.f32 %v1346, %v1352
          %v1357 = vadd.f32 %v1347, %v1353
          %v1358 = vadd.f32 %v1348, %v1354
          %v1359 = vadd.f32 %v1349, %v1355
          %1360 = vst.msk [vmem:[#allocation3] sm:$0xff] %vm1130, %v1356
          %1361 = vst.msk [vmem:[#allocation3 + $0x8] sm:$0xff] %vm1130, %v1357
          %1362 = vst.msk [vmem:[#allocation3 + $0x10] sm:$0xff] %vm1130, %v1358
          %1363 = vst.msk [vmem:[#allocation3 + $0x18] sm:$0xff] %vm1130, %v1359
        $region144: #{tpu_custom_call.1} parent=71 // pred_fallthru
          _
        %p1364 = scmp.eq.s32.totalorder %s38, 1
        %p1365 = pnand %p1364, %p1333
        %p1366 = pneg %p1365
        %p1367 = pnand %p1366, %p681
        %p1368 = pneg %p1367
        // Predicated region
        $region145: #{tpu_custom_call.1} parent=71 // pred_check
          _
        $region146: #{tpu_custom_call.1} parent=71 // pred_check_branch
          %1370 = sbr.rel (%p1367) target = $region148
        $region147: #{tpu_custom_call.1} parent=71 // pred_region
          %v1371 = vld [vmem:[#allocation3] sm:$0xff]
          %v1372 = vld [vmem:[#allocation3 + $0x8] sm:$0xff]
          %v1373 = vld [vmem:[#allocation3 + $0x10] sm:$0xff]
          %v1374 = vld [vmem:[#allocation3 + $0x18] sm:$0xff]
          %v1375 = vmax.f32 %v1371, 0.0
          %v1376 = vmax.f32 %v1372, 0.0
          %v1377 = vmax.f32 %v1373, 0.0
          %v1378 = vmax.f32 %v1374, 0.0
          %v1379 = vld [vmem:[#allocation26] sm:$0xff]
          %v1380 = vld [vmem:[#allocation27] sm:$0xff]
          %1382 = vset.pattern.permute.xlu0 0
          %1383 = vperm.xlu0 %1382, %v1380
          %v1384 = vpop.permute.xlu0 %1383
          %vm1386 = vcmask 261120
          %v1388 = vsel %vm1386, %v1379, 0
          %1390 = vmatprep.subr.mxu0 0.0
          %1391 = vmatpush1.msra.mxu0 %v1375
          %1392 = vmatprep.subr.mxu0 0.0
          %1393 = vmatpush1.msra.mxu0 %v1376
          %1394 = vmatprep.subr.mxu0 0.0
          %1395 = vmatpush1.msra.mxu0 %v1377
          %1396 = vmatprep.subr.mxu0 0.0
          %1397 = vmatpush1.msra.mxu0 %v1378
          %1398 = vmatprep.subr.mxu0 0.0
          %1399 = vmatpush1.msra.mxu0 0.0
          %1400 = vmatprep.subr.mxu0 0.0
          %1401 = vmatpush1.msra.mxu0 0.0
          %1402 = vmatprep.subr.mxu0 0.0
          %1403 = vmatpush1.msra.mxu0 0.0
          %1404 = vmatprep.subr.mxu0 0.0
          %1405 = vmatpush1.msra.mxu0 0.0
          %1406 = vmatprep.subr.mxu0 0.0
          %1407 = vmatpush1.msra.mxu0 0.0
          %1408 = vmatprep.subr.mxu0 0.0
          %1409 = vmatpush1.msra.mxu0 0.0
          %1410 = vmatprep.subr.mxu0 0.0
          %1411 = vmatpush1.msra.mxu0 0.0
          %1412 = vmatprep.subr.mxu0 0.0
          %1413 = vmatpush1.msra.mxu0 0.0
          %1414 = vmatprep.subr.mxu0 0.0
          %1415 = vmatpush1.msra.mxu0 0.0
          %1416 = vmatprep.subr.mxu0 0.0
          %1417 = vmatpush1.msra.mxu0 0.0
          %1418 = vmatprep.subr.mxu0 0.0
          %1419 = vmatpush1.msra.mxu0 0.0
          %1420 = vmatprep.subr.mxu0 0.0
          %1421 = vmatpush1.msra.mxu0 0.0
          %1422 = vmatprep.subr.mxu0 0.0
          %1423 = vmatpush1.msra.mxu0 0.0
          %1424 = vmatprep.subr.mxu0 0.0
          %1425 = vmatpush1.msra.mxu0 0.0
          %1426 = vmatprep.subr.mxu0 0.0
          %1427 = vmatpush1.msra.mxu0 0.0
          %1428 = vmatprep.subr.mxu0 0.0
          %1429 = vmatpush1.msra.mxu0 0.0
          %1430 = vmatprep.subr.mxu0 0.0
          %1431 = vmatpush1.msra.mxu0 0.0
          %1432 = vmatprep.subr.mxu0 0.0
          %1433 = vmatpush1.msra.mxu0 0.0
          %1434 = vmatprep.subr.mxu0 0.0
          %1435 = vmatpush1.msra.mxu0 0.0
          %1436 = vmatprep.subr.mxu0 0.0
          %1437 = vmatpush1.msra.mxu0 0.0
          %1438 = vmatprep.subr.mxu0 0.0
          %1439 = vmatpush1.msra.mxu0 0.0
          %1440 = vmatprep.subr.mxu0 0.0
          %1441 = vmatpush1.msra.mxu0 0.0
          %1442 = vmatprep.subr.mxu0 0.0
          %1443 = vmatpush1.msra.mxu0 0.0
          %1444 = vmatprep.subr.mxu0 0.0
          %1445 = vmatpush1.msra.mxu0 0.0
          %1446 = vmatprep.subr.mxu0 0.0
          %1447 = vmatpush1.msra.mxu0 0.0
          %1448 = vmatprep.subr.mxu0 0.0
          %1449 = vmatpush1.msra.mxu0 0.0
          %1450 = vmatprep.subr.mxu0 0.0
          %1451 = vmatpush1.msra.mxu0 0.0
          %1452 = vmatprep.subr.mxu0 0.0
          %1453 = vmatpush1.msra.mxu0 0.0
          %1454 = vmatprep.mubr.f32.mxu0 0.0
          %1455 = vmatmul.mubr.f32.gmra.mrb[0].mxu0 %v1388
          %v1456 = vpop.f32.mrb[0].mxu0
          %v1457 = vadd.f32 %v1384, %v1456
          %v1458 = vpop.f32.mrb[0].mxu0
          %1459 = vdwg.mxu0
          %1460 = vst.msk [vmem:[#allocation28] sm:$0xff] %vm1130, %v1457
        $region148: #{tpu_custom_call.1} parent=71 // pred_fallthru
          _
        // Predicated region
        $region149: #{tpu_custom_call.1} parent=71 // pred_check
          %p1461 = pneg %p355
        $region150: #{tpu_custom_call.1} parent=71 // pred_check_branch
          %1463 = sbr.rel (%p1461) target = $region152
        $region151: #{tpu_custom_call.1} parent=71 // pred_region
          %s1465 = ssub.s32 128, 128
          %1466 = vsyncadd [#allocation10], %s1465
          %s1468 = sshll.u32 [#allocation28], 4
          %s1469 = int_to_ptr.vmem [resolvable:$true] %s1468
          %1471 = dma.vmem_to_hbm [thread:$0]  %s1469, 128, %s13, [#allocation10]
        $region152: #{tpu_custom_call.1} parent=71 // pred_fallthru
          _
        // Predicated region
        $region153: #{tpu_custom_call.1} parent=71 // pred_check
          %p1472 = pneg %p355
        $region154: #{tpu_custom_call.1} parent=71 // pred_check_branch
          %1474 = sbr.rel (%p1472) target = $region156
        $region155: #{tpu_custom_call.1} parent=71 // pred_region
          %1475 = dma.done [#allocation10], 128
        $region156: #{tpu_custom_call.1} parent=71 // pred_fallthru
          _
      $region72: #{tpu_custom_call.1} parent=5 // pred_fallthru
        _
      %p1476 = scmp.le.s32.totalorder 2, %s28
      // Predicated region
      $region157: #{tpu_custom_call.1} parent=5 // pred_check
        %p1477 = pneg %p1476
      $region158: #{tpu_custom_call.1} parent=5 // pred_check_branch
        %1479 = sbr.rel (%p1477) target = $region160
      $region159: #{tpu_custom_call.1} parent=5 // pred_region
        %s1480 = ssub.s32 %s28, 2
      $region160: #{tpu_custom_call.1} parent=5 // pred_fallthru
        _
    $region6: #{tpu_custom_call.1} parent=1 // loop_footer
      %s32 = sadd.s32 1, %s28
    $region7: #{tpu_custom_call.1} parent=1 // loop_footer_branch
      %27 = sbr.rel target = $region3
    $region8: #{tpu_custom_call.1} parent=1 // loop_exit
      _
    %1481 = vsyncpa [#allocation9], 1
    %s1482 = scalar_lea.sflag [#allocation9], 1
    %1483 = vsyncpa %s1482, 1
    %1484 = vsyncpa [#allocation13], 1
    %1485 = vsyncpa [#allocation16], 1
    %1486 = vsyncpa [#allocation19], 1
    %s1487 = scalar_lea.sflag [#allocation19], 1
    %1488 = vsyncpa %s1487, 1
    %1489 = vsyncpa [#allocation22], 1
    %1490 = vsyncpa [#allocation10], 1
    %s1491 = scalar_lea.sflag [#allocation10], 1
    %1492 = vsyncpa %s1491, 1
    %1493 = vsyncpa [#allocation11], 1
    %s1494 = scalar_lea.sflag [#allocation11], 1
    %1495 = vsyncpa %s1494, 1

</llo_original>
